<compile_context>
chip_gen: v6e
topology: v6e:2x2x1
jax: 0.10.0
libtpu: 0.0.40
codegen_flags: <defaults>
</compile_context>

<pallas_src>
import functools

import jax
import jax.numpy as jnp
from jax import lax
from jax.experimental import pallas as pl
from jax.experimental.pallas import tpu as pltpu

EPS = 1e-5  # nn.InstanceNorm2d default


def _round_up(x, m):
    return (x + m - 1) // m * m


def _conv_stats_kernel(xa_ref, xb_ref, wt_ref, mask_ref,
                       y_ref, sum_ref, ssq_ref,
                       *, k, stride, Wp, PQ, Cout):
    # xa_ref/xb_ref: (1, Cin, s*PQ) current / next lane-tile of the flattened
    #                padded image (two BlockSpec views of the same HBM array),
    #                so every tap offset stays inside the concatenated window.
    # wt_ref:        (k*k, Cout, Cin) conv weight, tap-major.
    # mask_ref:      (1, PQ) 1.0 for valid virtual spatial positions, else 0.
    # y_ref:         (1, Cout, PQ) unnormalized conv output tile (lane-dense).
    # sum_ref/ssq_ref: (1, Cout, 1) running masked sum / sum-of-squares,
    #                resident across the spatial-tile ("arbitrary") grid axis.
    pt = pl.program_id(1)

    win = jnp.concatenate([xa_ref[0], xb_ref[0]], axis=-1)    # (Cin, 2*s*PQ)

    acc = jnp.zeros((Cout, PQ), jnp.float32)
    for t in range(k * k):                                    # implicit GEMM
        i, j = t // k, t % k
        off = i * Wp + j
        if stride == 1:
            xt = win[:, off:off + PQ]                         # (Cin, PQ)
        else:
            # TODO(synk): stride > 1 path uses a strided lax.slice; validated
            # only for stride == 1 on hardware.
            xt = lax.slice(win, (0, off),
                           (win.shape[0], off + stride * PQ), (1, stride))
        acc = acc + jnp.dot(wt_ref[t], xt,
                            preferred_element_type=jnp.float32)

    y_ref[0] = acc.astype(y_ref.dtype)

    @pl.when(pt == 0)
    def _():
        sum_ref[...] = jnp.zeros_like(sum_ref)
        ssq_ref[...] = jnp.zeros_like(ssq_ref)

    am = acc * mask_ref[...]                                  # (Cout, PQ)
    sum_ref[0] += jnp.sum(am, axis=-1, keepdims=True)
    ssq_ref[0] += jnp.sum(am * am, axis=-1, keepdims=True)


def _norm_relu_kernel(y_ref, scale_ref, shift_ref, o_ref):
    # Folded InstanceNorm affine + ReLU: out = max(y*scale + shift, 0).
    y = y_ref[0]                                              # (Cout, PQ)
    o = y * scale_ref[0] + shift_ref[0]
    o_ref[0] = jnp.maximum(o, 0.0).astype(o_ref.dtype)


def conv_pack_layer(x, weight, bias, gamma, beta, *, kernel_size, stride):
    """x: (N, Cin, H, W) f32 NCHW.  weight: (Cout, Cin, k, k).

    `bias` is accepted for API parity but unused: InstanceNorm's per-channel
    mean subtraction cancels a constant per-channel bias exactly.
    """
    del bias
    N, Cin, H, W = x.shape
    Cout = weight.shape[0]
    k = kernel_size
    s = stride
    p = k // 2

    # Reflection pad (glue).
    x_pad = jnp.pad(x, ((0, 0), (0, 0), (p, p), (p, p)), mode="reflect")
    Hp, Wp = H + 2 * p, W + 2 * p
    Ho = (Hp - k) // s + 1
    Wo = (Wp - k) // s + 1

    # Virtual spatial grid: Ho rows x Wp columns of the padded image.  Columns
    # >= Wo of each row are garbage (they read into the next padded row); they
    # are masked out of the statistics and sliced off at the very end.
    PV_raw = Ho * Wp
    OVR = (k - 1) * Wp + (k - 1)                  # largest static tap offset
    PQ = max(128, min(2048, _round_up(PV_raw, 128)))
    PQ = max(PQ, _round_up(OVR, 128))             # taps must fit in one tile
    PV = _round_up(PV_raw, PQ)
    PT = PV // PQ
    sPQ = s * PQ
    L = _round_up(max((PT + 1) * sPQ, Hp * Wp), sPQ)

    # Flattened padded image, zero-padded on the lane axis. No im2col.
    xf = x_pad.reshape(N, Cin, Hp * Wp).astype(jnp.float32)
    xf = jnp.pad(xf, ((0, 0), (0, 0), (0, L - Hp * Wp)))

    # Weight, tap-major: wt[i*k + j, co, ci] = weight[co, ci, i, j].
    wt = jnp.transpose(weight, (2, 3, 0, 1)).reshape(k * k, Cout, Cin)
    wt = wt.astype(jnp.float32)

    # Validity mask over the virtual spatial axis.
    q = jnp.arange(PV, dtype=jnp.int32)
    mask = ((q < PV_raw) & ((q % Wp) < Wo)).astype(jnp.float32)[None, :]

    kern1 = functools.partial(_conv_stats_kernel, k=k, stride=s, Wp=Wp,
                              PQ=PQ, Cout=Cout)
    y_raw, ssum, ssq = pl.pallas_call(
        kern1,
        out_shape=(
            jax.ShapeDtypeStruct((N, Cout, PV), jnp.float32),
            jax.ShapeDtypeStruct((N, Cout, 1), jnp.float32),
            jax.ShapeDtypeStruct((N, Cout, 1), jnp.float32),
        ),
        grid_spec=pltpu.PrefetchScalarGridSpec(
            num_scalar_prefetch=0,
            grid=(N, PT),
            in_specs=[
                pl.BlockSpec((1, Cin, sPQ), lambda n, t: (n, 0, t)),
                pl.BlockSpec((1, Cin, sPQ), lambda n, t: (n, 0, t + 1)),
                pl.BlockSpec((k * k, Cout, Cin), lambda n, t: (0, 0, 0)),
                pl.BlockSpec((1, PQ), lambda n, t: (0, t)),
            ],
            out_specs=[
                pl.BlockSpec((1, Cout, PQ), lambda n, t: (n, 0, t)),
                pl.BlockSpec((1, Cout, 1), lambda n, t: (n, 0, 0)),
                pl.BlockSpec((1, Cout, 1), lambda n, t: (n, 0, 0)),
            ],
        ),
        compiler_params=pltpu.CompilerParams(
            dimension_semantics=("parallel", "arbitrary"),
            vmem_limit_bytes=48 * 1024 * 1024),
    )(xf, xf, wt, mask)

    # Fold the InstanceNorm affine into a single FMA (tiny (N, Cout) math).
    cnt = float(Ho * Wo)
    mean = ssum[:, :, 0] / cnt
    var = jnp.maximum(ssq[:, :, 0] / cnt - mean * mean, 0.0)
    scale = gamma[None, :].astype(jnp.float32) * lax.rsqrt(var + EPS)
    shift = beta[None, :].astype(jnp.float32) - mean * scale

    y = pl.pallas_call(
        _norm_relu_kernel,
        out_shape=jax.ShapeDtypeStruct((N, Cout, PV), jnp.float32),
        grid_spec=pltpu.PrefetchScalarGridSpec(
            num_scalar_prefetch=0,
            grid=(N, PT),
            in_specs=[
                pl.BlockSpec((1, Cout, PQ), lambda n, t: (n, 0, t)),
                pl.BlockSpec((1, Cout, 1), lambda n, t: (n, 0, 0)),
                pl.BlockSpec((1, Cout, 1), lambda n, t: (n, 0, 0)),
            ],
            out_specs=pl.BlockSpec((1, Cout, PQ), lambda n, t: (n, 0, t)),
        ),
        compiler_params=pltpu.CompilerParams(
            dimension_semantics=("parallel", "arbitrary")),
    )(y_raw, scale[:, :, None], shift[:, :, None])

    # Drop invalid virtual columns; result is already NCHW (no transpose).
    out = y[:, :, :PV_raw].reshape(N, Cout, Ho, Wp)[:, :, :, :Wo]
    return out


def _reference(x, weight, bias, gamma, beta, *, kernel_size, stride):
    """Pure-JAX reference (includes the conv bias, which must cancel)."""
    p = kernel_size // 2
    x_pad = jnp.pad(x, ((0, 0), (0, 0), (p, p), (p, p)), mode="reflect")
    y = lax.conv_general_dilated(
        x_pad, weight, window_strides=(stride, stride), padding="VALID",
        dimension_numbers=("NCHW", "OIHW", "NCHW"))
    y = y + bias.reshape(1, -1, 1, 1)
    mean = jnp.mean(y, axis=(2, 3), keepdims=True)
    var = jnp.mean((y - mean) ** 2, axis=(2, 3), keepdims=True)
    y = (y - mean) / jnp.sqrt(var + EPS)
    y = gamma.reshape(1, -1, 1, 1) * y + beta.reshape(1, -1, 1, 1)
    return jnp.maximum(y, 0.0)


if __name__ == "__main__":
    # Small shapes consistent with the module.
    N, Cin, H, W = 2, 4, 16, 16
    Cout, ksz, stride = 8, 3, 1

    key = jax.random.PRNGKey(0)
    kx, kw, kb, kg, kbe = jax.random.split(key, 5)

    x = jax.random.normal(kx, (N, Cin, H, W), dtype=jnp.float32)
    weight = 0.1 * jax.random.normal(kw, (Cout, Cin, ksz, ksz), dtype=jnp.float32)
    bias = 0.1 * jax.random.normal(kb, (Cout,), dtype=jnp.float32)
    gamma = 1.0 + 0.1 * jax.random.normal(kg, (Cout,), dtype=jnp.float32)
    beta = 0.1 * jax.random.normal(kbe, (Cout,), dtype=jnp.float32)

    run = jax.jit(functools.partial(conv_pack_layer,
                                    kernel_size=ksz, stride=stride))
    out = jax.block_until_ready(run(x, weight, bias, gamma, beta))

    ref = _reference(x, weight, bias, gamma, beta,
                     kernel_size=ksz, stride=stride)
    assert out.shape == (N, Cout, H, W)
    assert jnp.allclose(out, ref, atol=2e-4, rtol=2e-4), \
        float(jnp.max(jnp.abs(out - ref)))

    print("KERNEL_OK")
</pallas_src>

<mosaic_0001>
module attributes {stable_mosaic.version = 11 : i64} {
  func.func @_norm_relu_kernel(%arg0: i32, %arg1: i32, %arg2: memref<1x8x384xf32, #tpu.memory_space<vmem>>, %arg3: memref<1x8x1xf32, #tpu.memory_space<vmem>>, %arg4: memref<1x8x1xf32, #tpu.memory_space<vmem>>, %arg5: memref<1x8x384xf32, #tpu.memory_space<vmem>>) attributes {dimension_semantics = [#tpu.dimension_semantics<parallel>, #tpu.dimension_semantics<arbitrary>], iteration_bounds = array<i64: 2, 1>, scalar_prefetch = 0 : i64, scratch_operands = 0 : i64, tpu.core_type = #tpu.core_type<tc>, window_params = [{transform_indices = @transform_0, window_bounds = array<i64: 1, 8, 384>}, {transform_indices = @transform_1, window_bounds = array<i64: 1, 8, 1>}, {transform_indices = @transform_2, window_bounds = array<i64: 1, 8, 1>}, {transform_indices = @transform_3, window_bounds = array<i64: 1, 8, 384>}]} {
    %c0 = arith.constant 0 : index
    %c0_0 = arith.constant 0 : index
    %c0_1 = arith.constant 0 : index
    %0 = vector.load %arg2[%c0, %c0_0, %c0_1] : memref<1x8x384xf32, #tpu.memory_space<vmem>>, vector<1x8x384xf32>
    %1 = vector.shape_cast %0 : vector<1x8x384xf32> to vector<8x384xf32>
    %c0_2 = arith.constant 0 : index
    %c0_3 = arith.constant 0 : index
    %c0_4 = arith.constant 0 : index
    %2 = vector.load %arg3[%c0_2, %c0_3, %c0_4] : memref<1x8x1xf32, #tpu.memory_space<vmem>>, vector<1x8x1xf32>
    %3 = vector.shape_cast %2 : vector<1x8x1xf32> to vector<8x1xf32>
    %4 = vector.broadcast %3 : vector<8x1xf32> to vector<8x384xf32>
    %5 = arith.mulf %1, %4 : vector<8x384xf32>
    %c0_5 = arith.constant 0 : index
    %c0_6 = arith.constant 0 : index
    %c0_7 = arith.constant 0 : index
    %6 = vector.load %arg4[%c0_5, %c0_6, %c0_7] : memref<1x8x1xf32, #tpu.memory_space<vmem>>, vector<1x8x1xf32>
    %7 = vector.shape_cast %6 : vector<1x8x1xf32> to vector<8x1xf32>
    %8 = vector.broadcast %7 : vector<8x1xf32> to vector<8x384xf32>
    %9 = arith.addf %5, %8 : vector<8x384xf32>
    %cst = arith.constant 0.000000e+00 : f32
    %10 = vector.broadcast %cst : f32 to vector<8x384xf32>
    %11 = arith.maximumf %9, %10 : vector<8x384xf32>
    %c0_8 = arith.constant 0 : index
    %c0_9 = arith.constant 0 : index
    %c0_10 = arith.constant 0 : index
    %12 = vector.load %arg5[%c0_8, %c0_9, %c0_10] : memref<1x8x384xf32, #tpu.memory_space<vmem>>, vector<1x8x384xf32>
    %13 = vector.shape_cast %12 : vector<1x8x384xf32> to vector<8x384xf32>
    %14 = vector.shape_cast %11 : vector<8x384xf32> to vector<1x8x384xf32>
    tpu.vector_store %arg5[%c0_8, %c0_9, %c0_10], %14 {strides = array<i32>} : memref<1x8x384xf32, #tpu.memory_space<vmem>>, vector<1x8x384xf32>,
    return
  }
  func.func @transform_0(%arg0: i32, %arg1: i32) -> (i32, i32, i32) {
    %c0_i32 = arith.constant 0 : i32
    %c0_i32_0 = arith.constant 0 : i32
    return %arg0, %c0_i32, %arg1 : i32, i32, i32
  }
  func.func @transform_1(%arg0: i32, %arg1: i32) -> (i32, i32, i32) {
    %c0_i32 = arith.constant 0 : i32
    %c0_i32_0 = arith.constant 0 : i32
    %c0_i32_1 = arith.constant 0 : i32
    return %arg0, %c0_i32, %c0_i32_0 : i32, i32, i32
  }
  func.func @transform_2(%arg0: i32, %arg1: i32) -> (i32, i32, i32) {
    %c0_i32 = arith.constant 0 : i32
    %c0_i32_0 = arith.constant 0 : i32
    %c0_i32_1 = arith.constant 0 : i32
    return %arg0, %c0_i32, %c0_i32_0 : i32, i32, i32
  }
  func.func @transform_3(%arg0: i32, %arg1: i32) -> (i32, i32, i32) {
    %c0_i32 = arith.constant 0 : i32
    %c0_i32_0 = arith.constant 0 : i32
    return %arg0, %c0_i32, %arg1 : i32, i32, i32
  }
}

module attributes {stable_mosaic.version = 11 : i64} {
  func.func @_conv_stats_kernel(%arg0: i32, %arg1: i32, %arg2: memref<1x4x384xf32, #tpu.memory_space<vmem>>, %arg3: memref<1x4x384xf32, #tpu.memory_space<vmem>>, %arg4: memref<9x8x4xf32, #tpu.memory_space<vmem>>, %arg5: memref<1x384xf32, #tpu.memory_space<vmem>>, %arg6: memref<1x8x384xf32, #tpu.memory_space<vmem>>, %arg7: memref<1x8x1xf32, #tpu.memory_space<vmem>>, %arg8: memref<1x8x1xf32, #tpu.memory_space<vmem>>) attributes {dimension_semantics = [#tpu.dimension_semantics<parallel>, #tpu.dimension_semantics<arbitrary>], iteration_bounds = array<i64: 2, 1>, scalar_prefetch = 0 : i64, scratch_operands = 0 : i64, tpu.core_type = #tpu.core_type<tc>, window_params = [{transform_indices = @transform_0, window_bounds = array<i64: 1, 4, 384>}, {transform_indices = @transform_1, window_bounds = array<i64: 1, 4, 384>}, {pipeline_mode = #tpu.pipeline_mode<synchronous>, transform_indices = @transform_2, window_bounds = array<i64: 9, 8, 4>}, {transform_indices = @transform_3, window_bounds = array<i64: 1, 384>}, {transform_indices = @transform_4, window_bounds = array<i64: 1, 8, 384>}, {transform_indices = @transform_5, window_bounds = array<i64: 1, 8, 1>}, {transform_indices = @transform_6, window_bounds = array<i64: 1, 8, 1>}]} {
    %c0 = arith.constant 0 : index
    %c0_0 = arith.constant 0 : index
    %c0_1 = arith.constant 0 : index
    %0 = vector.load %arg2[%c0, %c0_0, %c0_1] : memref<1x4x384xf32, #tpu.memory_space<vmem>>, vector<1x4x384xf32>
    %1 = vector.shape_cast %0 : vector<1x4x384xf32> to vector<4x384xf32>
    %c0_2 = arith.constant 0 : index
    %c0_3 = arith.constant 0 : index
    %c0_4 = arith.constant 0 : index
    %2 = vector.load %arg3[%c0_2, %c0_3, %c0_4] : memref<1x4x384xf32, #tpu.memory_space<vmem>>, vector<1x4x384xf32>
    %3 = vector.shape_cast %2 : vector<1x4x384xf32> to vector<4x384xf32>
    %4 = tpu.concatenate %1, %3 in 1 : vector<4x384xf32>, vector<4x384xf32> -> vector<4x768xf32>
    %cst = arith.constant 0.000000e+00 : f32
    %5 = vector.broadcast %cst : f32 to vector<8x384xf32>
    %6 = vector.extract_strided_slice %4 {offsets = [0, 0], sizes = [4, 384], strides = [1, 1]} : vector<4x768xf32> to vector<4x384xf32>
    %c0_5 = arith.constant 0 : index
    %c0_6 = arith.constant 0 : index
    %c0_7 = arith.constant 0 : index
    %7 = vector.load %arg4[%c0_5, %c0_6, %c0_7] : memref<9x8x4xf32, #tpu.memory_space<vmem>>, vector<1x8x4xf32>
    %8 = vector.shape_cast %7 : vector<1x8x4xf32> to vector<8x4xf32>
    %cst_8 = arith.constant dense<0.000000e+00> : vector<8x384xf32>
    %9 = tpu.matmul %8, %6, %cst_8 {dimension_numbers = #tpu.dot_dimension_numbers<[1], [0], [0], [1], [0, 0, 1, 1], [], []>} : vector<8x4xf32>, vector<4x384xf32>, vector<8x384xf32> -> vector<8x384xf32>
    %10 = arith.addf %5, %9 : vector<8x384xf32>
    %11 = vector.extract_strided_slice %4 {offsets = [0, 1], sizes = [4, 384], strides = [1, 1]} : vector<4x768xf32> to vector<4x384xf32>
    %c1 = arith.constant 1 : index
    %c0_9 = arith.constant 0 : index
    %c0_10 = arith.constant 0 : index
    %12 = vector.load %arg4[%c1, %c0_9, %c0_10] : memref<9x8x4xf32, #tpu.memory_space<vmem>>, vector<1x8x4xf32>
    %13 = vector.shape_cast %12 : vector<1x8x4xf32> to vector<8x4xf32>
    %cst_11 = arith.constant dense<0.000000e+00> : vector<8x384xf32>
    %14 = tpu.matmul %13, %11, %cst_11 {dimension_numbers = #tpu.dot_dimension_numbers<[1], [0], [0], [1], [0, 0, 1, 1], [], []>} : vector<8x4xf32>, vector<4x384xf32>, vector<8x384xf32> -> vector<8x384xf32>
    %15 = arith.addf %10, %14 : vector<8x384xf32>
    %16 = vector.extract_strided_slice %4 {offsets = [0, 2], sizes = [4, 384], strides = [1, 1]} : vector<4x768xf32> to vector<4x384xf32>
    %c2 = arith.constant 2 : index
    %c0_12 = arith.constant 0 : index
    %c0_13 = arith.constant 0 : index
    %17 = vector.load %arg4[%c2, %c0_12, %c0_13] : memref<9x8x4xf32, #tpu.memory_space<vmem>>, vector<1x8x4xf32>
    %18 = vector.shape_cast %17 : vector<1x8x4xf32> to vector<8x4xf32>
    %cst_14 = arith.constant dense<0.000000e+00> : vector<8x384xf32>
    %19 = tpu.matmul %18, %16, %cst_14 {dimension_numbers = #tpu.dot_dimension_numbers<[1], [0], [0], [1], [0, 0, 1, 1], [], []>} : vector<8x4xf32>, vector<4x384xf32>, vector<8x384xf32> -> vector<8x384xf32>
    %20 = arith.addf %15, %19 : vector<8x384xf32>
    %21 = vector.extract_strided_slice %4 {offsets = [0, 18], sizes = [4, 384], strides = [1, 1]} : vector<4x768xf32> to vector<4x384xf32>
    %c3 = arith.constant 3 : index
    %c0_15 = arith.constant 0 : index
    %c0_16 = arith.constant 0 : index
    %22 = vector.load %arg4[%c3, %c0_15, %c0_16] : memref<9x8x4xf32, #tpu.memory_space<vmem>>, vector<1x8x4xf32>
    %23 = vector.shape_cast %22 : vector<1x8x4xf32> to vector<8x4xf32>
    %cst_17 = arith.constant dense<0.000000e+00> : vector<8x384xf32>
    %24 = tpu.matmul %23, %21, %cst_17 {dimension_numbers = #tpu.dot_dimension_numbers<[1], [0], [0], [1], [0, 0, 1, 1], [], []>} : vector<8x4xf32>, vector<4x384xf32>, vector<8x384xf32> -> vector<8x384xf32>
    %25 = arith.addf %20, %24 : vector<8x384xf32>
    %26 = vector.extract_strided_slice %4 {offsets = [0, 19], sizes = [4, 384], strides = [1, 1]} : vector<4x768xf32> to vector<4x384xf32>
    %c4 = arith.constant 4 : index
    %c0_18 = arith.constant 0 : index
    %c0_19 = arith.constant 0 : index
    %27 = vector.load %arg4[%c4, %c0_18, %c0_19] : memref<9x8x4xf32, #tpu.memory_space<vmem>>, vector<1x8x4xf32>
    %28 = vector.shape_cast %27 : vector<1x8x4xf32> to vector<8x4xf32>
    %cst_20 = arith.constant dense<0.000000e+00> : vector<8x384xf32>
    %29 = tpu.matmul %28, %26, %cst_20 {dimension_numbers = #tpu.dot_dimension_numbers<[1], [0], [0], [1], [0, 0, 1, 1], [], []>} : vector<8x4xf32>, vector<4x384xf32>, vector<8x384xf32> -> vector<8x384xf32>
    %30 = arith.addf %25, %29 : vector<8x384xf32>
    %31 = vector.extract_strided_slice %4 {offsets = [0, 20], sizes = [4, 384], strides = [1, 1]} : vector<4x768xf32> to vector<4x384xf32>
    %c5 = arith.constant 5 : index
    %c0_21 = arith.constant 0 : index
    %c0_22 = arith.constant 0 : index
    %32 = vector.load %arg4[%c5, %c0_21, %c0_22] : memref<9x8x4xf32, #tpu.memory_space<vmem>>, vector<1x8x4xf32>
    %33 = vector.shape_cast %32 : vector<1x8x4xf32> to vector<8x4xf32>
    %cst_23 = arith.constant dense<0.000000e+00> : vector<8x384xf32>
    %34 = tpu.matmul %33, %31, %cst_23 {dimension_numbers = #tpu.dot_dimension_numbers<[1], [0], [0], [1], [0, 0, 1, 1], [], []>} : vector<8x4xf32>, vector<4x384xf32>, vector<8x384xf32> -> vector<8x384xf32>
    %35 = arith.addf %30, %34 : vector<8x384xf32>
    %36 = vector.extract_strided_slice %4 {offsets = [0, 36], sizes = [4, 384], strides = [1, 1]} : vector<4x768xf32> to vector<4x384xf32>
    %c6 = arith.constant 6 : index
    %c0_24 = arith.constant 0 : index
    %c0_25 = arith.constant 0 : index
    %37 = vector.load %arg4[%c6, %c0_24, %c0_25] : memref<9x8x4xf32, #tpu.memory_space<vmem>>, vector<1x8x4xf32>
    %38 = vector.shape_cast %37 : vector<1x8x4xf32> to vector<8x4xf32>
    %cst_26 = arith.constant dense<0.000000e+00> : vector<8x384xf32>
    %39 = tpu.matmul %38, %36, %cst_26 {dimension_numbers = #tpu.dot_dimension_numbers<[1], [0], [0], [1], [0, 0, 1, 1], [], []>} : vector<8x4xf32>, vector<4x384xf32>, vector<8x384xf32> -> vector<8x384xf32>
    %40 = arith.addf %35, %39 : vector<8x384xf32>
    %41 = vector.extract_strided_slice %4 {offsets = [0, 37], sizes = [4, 384], strides = [1, 1]} : vector<4x768xf32> to vector<4x384xf32>
    %c7 = arith.constant 7 : index
    %c0_27 = arith.constant 0 : index
    %c0_28 = arith.constant 0 : index
    %42 = vector.load %arg4[%c7, %c0_27, %c0_28] : memref<9x8x4xf32, #tpu.memory_space<vmem>>, vector<1x8x4xf32>
    %43 = vector.shape_cast %42 : vector<1x8x4xf32> to vector<8x4xf32>
    %cst_29 = arith.constant dense<0.000000e+00> : vector<8x384xf32>
    %44 = tpu.matmul %43, %41, %cst_29 {dimension_numbers = #tpu.dot_dimension_numbers<[1], [0], [0], [1], [0, 0, 1, 1], [], []>} : vector<8x4xf32>, vector<4x384xf32>, vector<8x384xf32> -> vector<8x384xf32>
    %45 = arith.addf %40, %44 : vector<8x384xf32>
    %46 = vector.extract_strided_slice %4 {offsets = [0, 38], sizes = [4, 384], strides = [1, 1]} : vector<4x768xf32> to vector<4x384xf32>
    %c8 = arith.constant 8 : index
    %c0_30 = arith.constant 0 : index
    %c0_31 = arith.constant 0 : index
    %47 = vector.load %arg4[%c8, %c0_30, %c0_31] : memref<9x8x4xf32, #tpu.memory_space<vmem>>, vector<1x8x4xf32>
    %48 = vector.shape_cast %47 : vector<1x8x4xf32> to vector<8x4xf32>
    %cst_32 = arith.constant dense<0.000000e+00> : vector<8x384xf32>
    %49 = tpu.matmul %48, %46, %cst_32 {dimension_numbers = #tpu.dot_dimension_numbers<[1], [0], [0], [1], [0, 0, 1, 1], [], []>} : vector<8x4xf32>, vector<4x384xf32>, vector<8x384xf32> -> vector<8x384xf32>
    %50 = arith.addf %45, %49 : vector<8x384xf32>
    %c0_33 = arith.constant 0 : index
    %c0_34 = arith.constant 0 : index
    %c0_35 = arith.constant 0 : index
    %51 = vector.load %arg6[%c0_33, %c0_34, %c0_35] : memref<1x8x384xf32, #tpu.memory_space<vmem>>, vector<1x8x384xf32>
    %52 = vector.shape_cast %51 : vector<1x8x384xf32> to vector<8x384xf32>
    %53 = vector.shape_cast %50 : vector<8x384xf32> to vector<1x8x384xf32>
    tpu.vector_store %arg6[%c0_33, %c0_34, %c0_35], %53 {strides = array<i32>} : memref<1x8x384xf32, #tpu.memory_space<vmem>>, vector<1x8x384xf32>,
    %c0_i32 = arith.constant 0 : i32
    %54 = arith.cmpi eq, %arg1, %c0_i32 : i32
    %55 = arith.extui %54 : i1 to i32
    %c0_i32_36 = arith.constant 0 : i32
    %56 = arith.cmpi ne, %55, %c0_i32_36 : i32
    scf.if %56 {
      %cst_53 = arith.constant 0.000000e+00 : f32
      %77 = vector.broadcast %cst_53 : f32 to vector<1x8x1xf32>
      %c0_54 = arith.constant 0 : index
      %c0_55 = arith.constant 0 : index
      %c0_56 = arith.constant 0 : index
      %78 = vector.load %arg7[%c0_54, %c0_55, %c0_56] : memref<1x8x1xf32, #tpu.memory_space<vmem>>, vector<1x8x1xf32>
      tpu.vector_store %arg7[%c0_54, %c0_55, %c0_56], %77 {strides = array<i32>} : memref<1x8x1xf32, #tpu.memory_space<vmem>>, vector<1x8x1xf32>,
      %cst_57 = arith.constant 0.000000e+00 : f32
      %79 = vector.broadcast %cst_57 : f32 to vector<1x8x1xf32>
      %c0_58 = arith.constant 0 : index
      %c0_59 = arith.constant 0 : index
      %c0_60 = arith.constant 0 : index
      %80 = vector.load %arg8[%c0_58, %c0_59, %c0_60] : memref<1x8x1xf32, #tpu.memory_space<vmem>>, vector<1x8x1xf32>
      tpu.vector_store %arg8[%c0_58, %c0_59, %c0_60], %79 {strides = array<i32>} : memref<1x8x1xf32, #tpu.memory_space<vmem>>, vector<1x8x1xf32>,
    } else {
    }
    %c0_37 = arith.constant 0 : index
    %c0_38 = arith.constant 0 : index
    %57 = vector.load %arg5[%c0_37, %c0_38] : memref<1x384xf32, #tpu.memory_space<vmem>>, vector<1x384xf32>
    %58 = vector.broadcast %57 : vector<1x384xf32> to vector<8x384xf32>
    %59 = arith.mulf %50, %58 : vector<8x384xf32>
    %c0_39 = arith.constant 0 : index
    %c0_40 = arith.constant 0 : index
    %c0_41 = arith.constant 0 : index
    %60 = vector.load %arg7[%c0_39, %c0_40, %c0_41] : memref<1x8x1xf32, #tpu.memory_space<vmem>>, vector<1x8x1xf32>
    %61 = vector.shape_cast %60 : vector<1x8x1xf32> to vector<8x1xf32>
    %cst_42 = arith.constant dense<0.000000e+00> : vector<8xf32>
    %62 = vector.multi_reduction <add>, %59, %cst_42 [1] : vector<8x384xf32> to vector<8xf32>
    %63 = vector.shape_cast %62 : vector<8xf32> to vector<8x1xf32>
    %64 = arith.addf %61, %63 : vector<8x1xf32>
    %c0_43 = arith.constant 0 : index
    %c0_44 = arith.constant 0 : index
    %c0_45 = arith.constant 0 : index
    %65 = vector.load %arg7[%c0_43, %c0_44, %c0_45] : memref<1x8x1xf32, #tpu.memory_space<vmem>>, vector<1x8x1xf32>
    %66 = vector.shape_cast %65 : vector<1x8x1xf32> to vector<8x1xf32>
    %67 = vector.shape_cast %64 : vector<8x1xf32> to vector<1x8x1xf32>
    tpu.vector_store %arg7[%c0_43, %c0_44, %c0_45], %67 {strides = array<i32>} : memref<1x8x1xf32, #tpu.memory_space<vmem>>, vector<1x8x1xf32>,
    %c0_46 = arith.constant 0 : index
    %c0_47 = arith.constant 0 : index
    %c0_48 = arith.constant 0 : index
    %68 = vector.load %arg8[%c0_46, %c0_47, %c0_48] : memref<1x8x1xf32, #tpu.memory_space<vmem>>, vector<1x8x1xf32>
    %69 = vector.shape_cast %68 : vector<1x8x1xf32> to vector<8x1xf32>
    %70 = arith.mulf %59, %59 : vector<8x384xf32>
    %cst_49 = arith.constant dense<0.000000e+00> : vector<8xf32>
    %71 = vector.multi_reduction <add>, %70, %cst_49 [1] : vector<8x384xf32> to vector<8xf32>
    %72 = vector.shape_cast %71 : vector<8xf32> to vector<8x1xf32>
    %73 = arith.addf %69, %72 : vector<8x1xf32>
    %c0_50 = arith.constant 0 : index
    %c0_51 = arith.constant 0 : index
    %c0_52 = arith.constant 0 : index
    %74 = vector.load %arg8[%c0_50, %c0_51, %c0_52] : memref<1x8x1xf32, #tpu.memory_space<vmem>>, vector<1x8x1xf32>
    %75 = vector.shape_cast %74 : vector<1x8x1xf32> to vector<8x1xf32>
    %76 = vector.shape_cast %73 : vector<8x1xf32> to vector<1x8x1xf32>
    tpu.vector_store %arg8[%c0_50, %c0_51, %c0_52], %76 {strides = array<i32>} : memref<1x8x1xf32, #tpu.memory_space<vmem>>, vector<1x8x1xf32>,
    return
  }
  func.func @transform_0(%arg0: i32, %arg1: i32) -> (i32, i32, i32) {
    %c0_i32 = arith.constant 0 : i32
    %c0_i32_0 = arith.constant 0 : i32
    return %arg0, %c0_i32, %arg1 : i32, i32, i32
  }
  func.func @transform_1(%arg0: i32, %arg1: i32) -> (i32, i32, i32) {
    %c1_i32 = arith.constant 1 : i32
    %0 = arith.addi %arg1, %c1_i32 : i32
    %c0_i32 = arith.constant 0 : i32
    %c0_i32_0 = arith.constant 0 : i32
    return %arg0, %c0_i32, %0 : i32, i32, i32
  }
  func.func @transform_2(%arg0: i32, %arg1: i32) -> (i32, i32, i32) {
    %c0_i32 = arith.constant 0 : i32
    %c0_i32_0 = arith.constant 0 : i32
    %c0_i32_1 = arith.constant 0 : i32
    %c0_i32_2 = arith.constant 0 : i32
    return %c0_i32, %c0_i32_0, %c0_i32_1 : i32, i32, i32
  }
  func.func @transform_3(%arg0: i32, %arg1: i32) -> (i32, i32) {
    %c0_i32 = arith.constant 0 : i32
    %c0_i32_0 = arith.constant 0 : i32
    return %c0_i32, %arg1 : i32, i32
  }
  func.func @transform_4(%arg0: i32, %arg1: i32) -> (i32, i32, i32) {
    %c0_i32 = arith.constant 0 : i32
    %c0_i32_0 = arith.constant 0 : i32
    return %arg0, %c0_i32, %arg1 : i32, i32, i32
  }
  func.func @transform_5(%arg0: i32, %arg1: i32) -> (i32, i32, i32) {
    %c0_i32 = arith.constant 0 : i32
    %c0_i32_0 = arith.constant 0 : i32
    %c0_i32_1 = arith.constant 0 : i32
    return %arg0, %c0_i32, %c0_i32_0 : i32, i32, i32
  }
  func.func @transform_6(%arg0: i32, %arg1: i32) -> (i32, i32, i32) {
    %c0_i32 = arith.constant 0 : i32
    %c0_i32_0 = arith.constant 0 : i32
    %c0_i32_1 = arith.constant 0 : i32
    return %arg0, %c0_i32, %c0_i32_0 : i32, i32, i32
  }
}

</mosaic_0001>

<llo_original>
// kernel: conv_pack_layer.3
$region0: #{conv_pack_layer.3}
  #allocation0 [shape = 'u32[]', space=smem, size = 0x4, offset = 0x4, fixed_abs, tag = 'smem constant byte address 0x4 - core index']
  #allocation1 [shape = 'u32[144,128]{1,0:T(1,128)}', space=vmem, size = 0x12000, scoped, tag = 'internal scratch']
  %s0 = inlined_call_operand.vmem [shape: f32[2,8,384], index: 0, kind: input, shape index: {}]
  %s1 = inlined_call_operand.vmem [shape: f32[2,8,1], index: 1, kind: input, shape index: {}]
  %s2 = inlined_call_operand.vmem [shape: f32[2,8,1], index: 2, kind: input, shape index: {}]
  %s3 = inlined_call_operand.vmem [shape: f32[2,8,384], index: 3, kind: output, shape index: {}]
  %s4 = sld [smem:[#allocation0]]
  $region45: #{conv_pack_layer.3} parent=0
    _
  %s6 = ssub.s32 1, %s4
  %s7 = scalar_select 0, %s6, %s4
  loop: start=0, step=1, limit=4
  $region2: #{conv_pack_layer.3} parent=0 // loop_pre_header
    _
  $region3: #{conv_pack_layer.3} parent=0 // loop_header
    %s9 = sphi 0, %s13
    %p10 = scmp.ge.s32.totalorder %s9, 4
    %s16 = sphi 0, %s28
    %s17 = sphi 0, %s24
    %s18 = sphi 0, %s16
    %s19 = sphi 0, %s17
    %s20 = sphi 0, %s18
    %s21 = sphi 0, %s19
    %s33 = sphi 0, %s35
    %s36 = sphi 0, %s33
    %s37 = sphi 0, %s36
    %s53 = sphi 0, %s37
    %s59 = sphi 0, %s61
    %s62 = sphi 0, %s59
    %s63 = sphi 0, %s62
    %s79 = sphi 0, %s63
    %s85 = sphi 0, %s87
    %s88 = sphi 0, %s85
    %s89 = sphi 0, %s88
    %s105 = sphi 0, %s89
    %s113 = sphi 0, %s115
    %s116 = sphi 0, %s113
    %s117 = sphi 0, %s116
    %s133 = sphi 0, %s117
  $region4: #{conv_pack_layer.3} parent=0 // loop_header_branch
    %12 = sbr.rel (%p10) target = $region8
  $region5: #{conv_pack_layer.3} parent=0 // loop_body
    %s14 = ssub.s32 %s9, 1
    %s15 = ssub.s32 %s9, 2
    %s22 = sadd.s32 1, %s17
    %p23 = scmp.ge.s32.totalorder %s22, 1
    %s24 = scalar_select %p23, 0, %s22
    %s25 = sadd.s32 1, %s16
    %s26 = scalar_select %p23, %s25, %s16
    %p27 = scmp.ge.s32.totalorder %s26, 2
    %s28 = scalar_select %p27, 0, %s26
    %s29 = ssub.s32 %s16, %s28
    %s30 = ssub.s32 %s17, %s24
    %s31 = sor.u32 %s29, %s30
    %p32 = scmp.eq.s32.totalorder %s31, 0
    %s34 = sadd.s32 %s33, 1
    %s35 = scalar_select %p32, %s33, %s34
    %p38 = pneg %p32
    %p39 = scmp.eq.s32.totalorder %s9, 1
    %p40 = por %p38, %p39
    %p41 = scmp.ne.s32.totalorder %s33, %s36
    %p42 = scmp.eq.s32.totalorder %s9, 0
    %p43 = por %p41, %p42
    %p44 = scmp.ne.s32.totalorder %s33, %s36
    %p45 = scmp.eq.s32.totalorder %s14, 1
    %p46 = por %p44, %p45
    %p47 = scmp.ne.s32.totalorder %s36, %s37
    %p48 = scmp.eq.s32.totalorder %s14, 0
    %p49 = por %p47, %p48
    %p50 = scmp.ne.s32.totalorder %s36, %s37
    %p51 = scmp.eq.s32.totalorder %s15, 1
    %p52 = por %p50, %p51
    %p54 = scmp.ne.s32.totalorder %s37, %s53
    %p55 = scmp.eq.s32.totalorder %s15, 0
    %p56 = por %p54, %p55
    %s57 = ssub.s32 %s16, %s28
    %p58 = scmp.eq.s32.totalorder %s57, 0
    %s60 = sadd.s32 %s59, 1
    %s61 = scalar_select %p58, %s59, %s60
    %p64 = pneg %p58
    %p65 = scmp.eq.s32.totalorder %s9, 1
    %p66 = por %p64, %p65
    %p67 = scmp.ne.s32.totalorder %s59, %s62
    %p68 = scmp.eq.s32.totalorder %s9, 0
    %p69 = por %p67, %p68
    %p70 = scmp.ne.s32.totalorder %s59, %s62
    %p71 = scmp.eq.s32.totalorder %s14, 1
    %p72 = por %p70, %p71
    %p73 = scmp.ne.s32.totalorder %s62, %s63
    %p74 = scmp.eq.s32.totalorder %s14, 0
    %p75 = por %p73, %p74
    %p76 = scmp.ne.s32.totalorder %s62, %s63
    %p77 = scmp.eq.s32.totalorder %s15, 1
    %p78 = por %p76, %p77
    %p80 = scmp.ne.s32.totalorder %s63, %s79
    %p81 = scmp.eq.s32.totalorder %s15, 0
    %p82 = por %p80, %p81
    %s83 = ssub.s32 %s16, %s28
    %p84 = scmp.eq.s32.totalorder %s83, 0
    %s86 = sadd.s32 %s85, 1
    %s87 = scalar_select %p84, %s85, %s86
    %p90 = pneg %p84
    %p91 = scmp.eq.s32.totalorder %s9, 1
    %p92 = por %p90, %p91
    %p93 = scmp.ne.s32.totalorder %s85, %s88
    %p94 = scmp.eq.s32.totalorder %s9, 0
    %p95 = por %p93, %p94
    %p96 = scmp.ne.s32.totalorder %s85, %s88
    %p97 = scmp.eq.s32.totalorder %s14, 1
    %p98 = por %p96, %p97
    %p99 = scmp.ne.s32.totalorder %s88, %s89
    %p100 = scmp.eq.s32.totalorder %s14, 0
    %p101 = por %p99, %p100
    %p102 = scmp.ne.s32.totalorder %s88, %s89
    %p103 = scmp.eq.s32.totalorder %s15, 1
    %p104 = por %p102, %p103
    %p106 = scmp.ne.s32.totalorder %s89, %s105
    %p107 = scmp.eq.s32.totalorder %s15, 0
    %p108 = por %p106, %p107
    %s109 = ssub.s32 %s16, %s28
    %s110 = ssub.s32 %s17, %s24
    %s111 = sor.u32 %s109, %s110
    %p112 = scmp.eq.s32.totalorder %s111, 0
    %s114 = sadd.s32 %s113, 1
    %s115 = scalar_select %p112, %s113, %s114
    %p118 = pneg %p112
    %p119 = scmp.eq.s32.totalorder %s9, 1
    %p120 = por %p118, %p119
    %p121 = scmp.ne.s32.totalorder %s113, %s116
    %p122 = scmp.eq.s32.totalorder %s9, 0
    %p123 = por %p121, %p122
    %p124 = scmp.ne.s32.totalorder %s113, %s116
    %p125 = scmp.eq.s32.totalorder %s14, 1
    %p126 = por %p124, %p125
    %p127 = scmp.ne.s32.totalorder %s116, %s117
    %p128 = scmp.eq.s32.totalorder %s14, 0
    %p129 = por %p127, %p128
    %p130 = scmp.ne.s32.totalorder %s116, %s117
    %p131 = scmp.eq.s32.totalorder %s15, 1
    %p132 = por %p130, %p131
    %p134 = scmp.ne.s32.totalorder %s117, %s133
    %p135 = scmp.eq.s32.totalorder %s15, 0
    %p136 = por %p134, %p135
    %p137 = scmp.le.s32.totalorder 1, %s9
    %p138 = scmp.lt.s32.totalorder %s9, 3
    %p139 = pnand %p137, %p138
    %p140 = pneg %p139
    // Predicated region
    $region9: #{conv_pack_layer.3} parent=5 // pred_check
      _
    $region10: #{conv_pack_layer.3} parent=5 // pred_check_branch
      %142 = sbr.rel (%p139) target = $region12
    $region11: #{conv_pack_layer.3} parent=5 // pred_region
      %s143 = ssub.s32 %s9, 1
    $region12: #{conv_pack_layer.3} parent=5 // pred_fallthru
      _
    %p144 = scmp.lt.s32.totalorder %s9, 2
    // Predicated region
    $region13: #{conv_pack_layer.3} parent=5 // pred_check
      %p145 = pneg %p144
    $region14: #{conv_pack_layer.3} parent=5 // pred_check_branch
      %147 = sbr.rel (%p145) target = $region16
    $region15: #{conv_pack_layer.3} parent=5 // pred_region
      // Predicated region
      $region17: #{conv_pack_layer.3} parent=15 // pred_check
        %p148 = pneg %p43
      $region18: #{conv_pack_layer.3} parent=15 // pred_check_branch
        %150 = sbr.rel (%p148) target = $region20
      $region19: #{conv_pack_layer.3} parent=15 // pred_region
        %s151 = smul.u32 3, %s17
        %p152 = scmp.lt.s32.totalorder %s16, 1
        %s153 = scalar_select %p152, %s16, 1
        %p154 = scmp.lt.s32.totalorder %s151, 2
        %s155 = scalar_select %p154, %s151, 2
        %s156 = smul.addr %s153, 3
        %s157 = sadd.s32 %s155, %s156
        %s158 = smul.addr %s157, 8
        %s159 = scalar_lea.vmem %s0, %s158
        %s160 = smul.u32 3, %s17
      $region20: #{conv_pack_layer.3} parent=15 // pred_fallthru
        _
      // Predicated region
      $region21: #{conv_pack_layer.3} parent=15 // pred_check
        %p161 = pneg %p69
      $region22: #{conv_pack_layer.3} parent=15 // pred_check_branch
        %163 = sbr.rel (%p161) target = $region24
      $region23: #{conv_pack_layer.3} parent=15 // pred_region
        %p164 = scmp.lt.s32.totalorder %s16, 1
        %s165 = scalar_select %p164, %s16, 1
        %s166 = smul.addr %s165, 8
        %s167 = scalar_lea.vmem %s1, %s166
      $region24: #{conv_pack_layer.3} parent=15 // pred_fallthru
        _
      // Predicated region
      $region25: #{conv_pack_layer.3} parent=15 // pred_check
        %p168 = pneg %p95
      $region26: #{conv_pack_layer.3} parent=15 // pred_check_branch
        %170 = sbr.rel (%p168) target = $region28
      $region27: #{conv_pack_layer.3} parent=15 // pred_region
        %p171 = scmp.lt.s32.totalorder %s16, 1
        %s172 = scalar_select %p171, %s16, 1
        %s173 = smul.addr %s172, 8
        %s174 = scalar_lea.vmem %s2, %s173
      $region28: #{conv_pack_layer.3} parent=15 // pred_fallthru
        _
    $region16: #{conv_pack_layer.3} parent=5 // pred_fallthru
      _
    %p175 = scmp.le.s32.totalorder 1, %s9
    %p176 = scmp.lt.s32.totalorder %s9, 3
    %p177 = pnand %p175, %p176
    %p178 = pneg %p177
    // Predicated region
    $region29: #{conv_pack_layer.3} parent=5 // pred_check
      _
    $region30: #{conv_pack_layer.3} parent=5 // pred_check_branch
      %180 = sbr.rel (%p177) target = $region32
    $region31: #{conv_pack_layer.3} parent=5 // pred_region
      %s181 = ssub.s32 %s9, 1
      %s182 = smul.u32 3, %s19
      %p183 = scmp.lt.s32.totalorder %s18, 1
      %s184 = scalar_select %p183, %s18, 1
      %p185 = scmp.lt.s32.totalorder %s182, 2
      %s186 = scalar_select %p185, %s182, 2
      %s187 = smul.addr %s184, 3
      %s188 = sadd.s32 %s186, %s187
      %s189 = smul.addr %s188, 8
      %s190 = scalar_lea.vmem %s0, %s189
      %p191 = pneg %p49
      %p192 = pneg %p46
      %p193 = scmp.lt.s32.totalorder %s18, 1
      %s194 = scalar_select %p193, %s18, 1
      %s195 = smul.addr %s194, 8
      %s196 = scalar_lea.vmem %s1, %s195
      %p197 = pneg %p75
      %p198 = pneg %p72
      %p199 = scmp.lt.s32.totalorder %s18, 1
      %s200 = scalar_select %p199, %s18, 1
      %s201 = smul.addr %s200, 8
      %s202 = scalar_lea.vmem %s2, %s201
      %p203 = pneg %p101
      %p204 = pneg %p98
      %p205 = pneg %p129
      %p206 = pneg %p126
      %s207 = smul.u32 3, %s19
      %p208 = scmp.lt.s32.totalorder %s18, 1
      %s209 = scalar_select %p208, %s18, 1
      %p210 = scmp.lt.s32.totalorder %s207, 2
      %s211 = scalar_select %p210, %s207, 2
      %s212 = smul.addr %s209, 3
      %s213 = sadd.s32 %s211, %s212
      %s214 = smul.addr %s213, 8
      %s215 = scalar_lea.vmem %s3, %s214
      %s216 = smul.u32 3, %s19
      %p217 = scmp.lt.s32.totalorder %s18, 1
      %s218 = scalar_select %p217, %s18, 1
      %p219 = scmp.lt.s32.totalorder %s216, 2
      %s220 = scalar_select %p219, %s216, 2
      %s221 = smul.addr %s218, 3
      %s222 = sadd.s32 %s220, %s221
      %s223 = smul.addr %s222, 8
      %s224 = scalar_lea.vmem %s0, %s223
      %s225 = smul.u32 3, %s19
      %p226 = scmp.lt.s32.totalorder %s18, 1
      %s227 = scalar_select %p226, %s18, 1
      %s228 = smul.addr %s227, 8
      %s229 = scalar_lea.vmem %s1, %s228
      %p230 = scmp.lt.s32.totalorder %s18, 1
      %s231 = scalar_select %p230, %s18, 1
      %s232 = smul.addr %s231, 8
      %s233 = scalar_lea.vmem %s2, %s232
      %s234 = smul.u32 3, %s19
      %p235 = scmp.lt.s32.totalorder %s18, 1
      %s236 = scalar_select %p235, %s18, 1
      %p237 = scmp.lt.s32.totalorder %s234, 2
      %s238 = scalar_select %p237, %s234, 2
      %s239 = smul.addr %s236, 3
      %s240 = sadd.s32 %s238, %s239
      %s241 = smul.addr %s240, 8
      %s242 = scalar_lea.vmem %s3, %s241
      %s243 = smul.u32 3, %s19
      %v244 = vld [vmem:[%s224] sm:$0xff]
      %v245 = vld [vmem:[%s224 + $0x8] sm:$0xff]
      %v246 = vld [vmem:[%s224 + $0x10] sm:$0xff]
      %v247 = vld [vmem:[%s229] sm:$0xff]
      %249 = vset.pattern.permute.xlu0 0
      %250 = vperm.xlu0 %249, %v247
      %v251 = vpop.permute.xlu0 %250
      %v253 = vmul.f32 %v244, %v251
      %v254 = vmul.f32 %v245, %v251
      %v255 = vmul.f32 %v246, %v251
      %v256 = vld [vmem:[%s233] sm:$0xff]
      %258 = vset.pattern.permute.xlu0 0
      %259 = vperm.xlu0 %258, %v256
      %v260 = vpop.permute.xlu0 %259
      %v262 = vadd.f32 %v253, %v260
      %v263 = vadd.f32 %v254, %v260
      %v264 = vadd.f32 %v255, %v260
      %v265 = vmax.f32 %v262, 0.0
      %v266 = vmax.f32 %v263, 0.0
      %v267 = vmax.f32 %v264, 0.0
      %268 = vst [vmem:[%s242] sm:$0xff] %v265
      %269 = vst [vmem:[%s242 + $0x8] sm:$0xff] %v266
      %270 = vst [vmem:[%s242 + $0x10] sm:$0xff] %v267
      %s271 = smul.u32 3, %s19
      %p272 = scmp.lt.s32.totalorder %s18, 1
      %s273 = scalar_select %p272, %s18, 1
      %p274 = scmp.lt.s32.totalorder %s271, 2
      %s275 = scalar_select %p274, %s271, 2
      %s276 = smul.addr %s273, 3
      %s277 = sadd.s32 %s275, %s276
      %s278 = smul.addr %s277, 8
      %s279 = scalar_lea.vmem %s3, %s278
      // Predicated region
      $region33: #{conv_pack_layer.3} parent=31 // pred_check
        %p280 = pneg %p126
      $region34: #{conv_pack_layer.3} parent=31 // pred_check_branch
        %282 = sbr.rel (%p280) target = $region36
      $region35: #{conv_pack_layer.3} parent=31 // pred_region
        %s283 = smul.u32 3, %s19
      $region36: #{conv_pack_layer.3} parent=31 // pred_fallthru
        _
    $region32: #{conv_pack_layer.3} parent=5 // pred_fallthru
      _
    %p284 = scmp.le.s32.totalorder 2, %s9
    // Predicated region
    $region37: #{conv_pack_layer.3} parent=5 // pred_check
      %p285 = pneg %p284
    $region38: #{conv_pack_layer.3} parent=5 // pred_check_branch
      %287 = sbr.rel (%p285) target = $region40
    $region39: #{conv_pack_layer.3} parent=5 // pred_region
      %s288 = ssub.s32 %s9, 2
      // Predicated region
      $region41: #{conv_pack_layer.3} parent=39 // pred_check
        %p289 = pneg %p132
      $region42: #{conv_pack_layer.3} parent=39 // pred_check_branch
        %291 = sbr.rel (%p289) target = $region44
      $region43: #{conv_pack_layer.3} parent=39 // pred_region
        %s292 = smul.u32 3, %s21
        %p293 = scmp.lt.s32.totalorder %s20, 1
        %s294 = scalar_select %p293, %s20, 1
        %p295 = scmp.lt.s32.totalorder %s292, 2
        %s296 = scalar_select %p295, %s292, 2
        %s297 = smul.addr %s294, 3
        %s298 = sadd.s32 %s296, %s297
        %s299 = smul.addr %s298, 8
        %s300 = scalar_lea.vmem %s3, %s299
      $region44: #{conv_pack_layer.3} parent=39 // pred_fallthru
        _
    $region40: #{conv_pack_layer.3} parent=5 // pred_fallthru
      _
  $region6: #{conv_pack_layer.3} parent=0 // loop_footer
    %s13 = sadd.s32 1, %s9
  $region7: #{conv_pack_layer.3} parent=0 // loop_footer_branch
    %8 = sbr.rel target = $region3
  $region8: #{conv_pack_layer.3} parent=0 // loop_exit
    _

// kernel: conv_pack_layer.2
$region0: #{conv_pack_layer.2}
  #allocation0 [shape = 'u32[]', space=smem, size = 0x4, offset = 0x4, fixed_abs, tag = 'smem constant byte address 0x4 - core index']
  #allocation1 [shape = 'u32[144,128]{1,0:T(1,128)}', space=vmem, size = 0x12000, scoped, tag = 'internal scratch']
  %s0 = inlined_call_operand.vmem [shape: f32[2,4,768], index: 0, kind: input, shape index: {}, may-alias: {0,1}]
  %s1 = inlined_call_operand.vmem [shape: f32[2,4,768], index: 1, kind: input, shape index: {}, may-alias: {0,1}]
  %s2 = inlined_call_operand.vmem [shape: f32[9,8,4], index: 2, kind: input, shape index: {}]
  %s3 = inlined_call_operand.vmem [shape: f32[1,384], index: 3, kind: input, shape index: {}]
  %s4 = inlined_call_operand.vmem [shape: f32[2,8,384], index: 4, kind: output, shape index: {0}]
  %s5 = inlined_call_operand.vmem [shape: f32[2,8,1], index: 5, kind: output, shape index: {1}]
  %s6 = inlined_call_operand.vmem [shape: f32[2,8,1], index: 6, kind: output, shape index: {2}]
  %7 = xla_tuple %s4, %s5, %s6
  %s8 = sld [smem:[#allocation0]]
  $region69: #{conv_pack_layer.2} parent=0
    _
  %s10 = ssub.s32 1, %s8
  %s11 = scalar_select 0, %s10, %s8
  loop: start=0, step=1, limit=4
  $region2: #{conv_pack_layer.2} parent=0 // loop_pre_header
    _
  $region3: #{conv_pack_layer.2} parent=0 // loop_header
    %s13 = sphi 0, %s17
    %p14 = scmp.ge.s32.totalorder %s13, 4
    %s20 = sphi 0, %s32
    %s21 = sphi 0, %s28
    %s22 = sphi 0, %s20
    %s23 = sphi 0, %s21
    %s24 = sphi 0, %s22
    %s25 = sphi 0, %s23
    %s37 = sphi 0, %s39
    %s40 = sphi 0, %s37
    %s41 = sphi 0, %s40
    %s57 = sphi 0, %s41
    %s67 = sphi 0, %s69
    %s70 = sphi 0, %s67
    %s71 = sphi 0, %s70
    %s87 = sphi 0, %s71
    %s91 = sphi 0, %s91
    %s93 = sphi 0, %s91
    %s94 = sphi 0, %s93
    %s108 = sphi 0, %s94
    %s114 = sphi 0, %s116
    %s117 = sphi 0, %s114
    %s118 = sphi 0, %s117
    %s134 = sphi 0, %s118
    %s142 = sphi 0, %s144
    %s145 = sphi 0, %s142
    %s146 = sphi 0, %s145
    %s162 = sphi 0, %s146
    %s168 = sphi 0, %s170
    %s171 = sphi 0, %s168
    %s172 = sphi 0, %s171
    %s188 = sphi 0, %s172
    %s194 = sphi 0, %s196
    %s197 = sphi 0, %s194
    %s198 = sphi 0, %s197
    %s214 = sphi 0, %s198
  $region4: #{conv_pack_layer.2} parent=0 // loop_header_branch
    %16 = sbr.rel (%p14) target = $region8
  $region5: #{conv_pack_layer.2} parent=0 // loop_body
    %s18 = ssub.s32 %s13, 1
    %s19 = ssub.s32 %s13, 2
    %s26 = sadd.s32 1, %s21
    %p27 = scmp.ge.s32.totalorder %s26, 1
    %s28 = scalar_select %p27, 0, %s26
    %s29 = sadd.s32 1, %s20
    %s30 = scalar_select %p27, %s29, %s20
    %p31 = scmp.ge.s32.totalorder %s30, 2
    %s32 = scalar_select %p31, 0, %s30
    %s33 = ssub.s32 %s20, %s32
    %s34 = ssub.s32 %s21, %s28
    %s35 = sor.u32 %s33, %s34
    %p36 = scmp.eq.s32.totalorder %s35, 0
    %s38 = sadd.s32 %s37, 1
    %s39 = scalar_select %p36, %s37, %s38
    %p42 = pneg %p36
    %p43 = scmp.eq.s32.totalorder %s13, 1
    %p44 = por %p42, %p43
    %p45 = scmp.ne.s32.totalorder %s37, %s40
    %p46 = scmp.eq.s32.totalorder %s13, 0
    %p47 = por %p45, %p46
    %p48 = scmp.ne.s32.totalorder %s37, %s40
    %p49 = scmp.eq.s32.totalorder %s18, 1
    %p50 = por %p48, %p49
    %p51 = scmp.ne.s32.totalorder %s40, %s41
    %p52 = scmp.eq.s32.totalorder %s18, 0
    %p53 = por %p51, %p52
    %p54 = scmp.ne.s32.totalorder %s40, %s41
    %p55 = scmp.eq.s32.totalorder %s19, 1
    %p56 = por %p54, %p55
    %p58 = scmp.ne.s32.totalorder %s41, %s57
    %p59 = scmp.eq.s32.totalorder %s19, 0
    %p60 = por %p58, %p59
    %s61 = sadd.s32 %s21, 1
    %s62 = sadd.s32 %s28, 1
    %s63 = ssub.s32 %s20, %s32
    %s64 = ssub.s32 %s61, %s62
    %s65 = sor.u32 %s63, %s64
    %p66 = scmp.eq.s32.totalorder %s65, 0
    %s68 = sadd.s32 %s67, 1
    %s69 = scalar_select %p66, %s67, %s68
    %p72 = pneg %p66
    %p73 = scmp.eq.s32.totalorder %s13, 1
    %p74 = por %p72, %p73
    %p75 = scmp.ne.s32.totalorder %s67, %s70
    %p76 = scmp.eq.s32.totalorder %s13, 0
    %p77 = por %p75, %p76
    %p78 = scmp.ne.s32.totalorder %s67, %s70
    %p79 = scmp.eq.s32.totalorder %s18, 1
    %p80 = por %p78, %p79
    %p81 = scmp.ne.s32.totalorder %s70, %s71
    %p82 = scmp.eq.s32.totalorder %s18, 0
    %p83 = por %p81, %p82
    %p84 = scmp.ne.s32.totalorder %s70, %s71
    %p85 = scmp.eq.s32.totalorder %s19, 1
    %p86 = por %p84, %p85
    %p88 = scmp.ne.s32.totalorder %s71, %s87
    %p89 = scmp.eq.s32.totalorder %s19, 0
    %p90 = por %p88, %p89
    %s92 = sadd.s32 %s91, 1
    %p95 = scmp.eq.s32.totalorder %s13, 1
    %p96 = scmp.ne.s32.totalorder %s91, %s93
    %p97 = scmp.eq.s32.totalorder %s13, 0
    %p98 = por %p96, %p97
    %p99 = scmp.ne.s32.totalorder %s91, %s93
    %p100 = scmp.eq.s32.totalorder %s18, 1
    %p101 = por %p99, %p100
    %p102 = scmp.ne.s32.totalorder %s93, %s94
    %p103 = scmp.eq.s32.totalorder %s18, 0
    %p104 = por %p102, %p103
    %p105 = scmp.ne.s32.totalorder %s93, %s94
    %p106 = scmp.eq.s32.totalorder %s19, 1
    %p107 = por %p105, %p106
    %p109 = scmp.ne.s32.totalorder %s94, %s108
    %p110 = scmp.eq.s32.totalorder %s19, 0
    %p111 = por %p109, %p110
    %s112 = ssub.s32 %s21, %s28
    %p113 = scmp.eq.s32.totalorder %s112, 0
    %s115 = sadd.s32 %s114, 1
    %s116 = scalar_select %p113, %s114, %s115
    %p119 = pneg %p113
    %p120 = scmp.eq.s32.totalorder %s13, 1
    %p121 = por %p119, %p120
    %p122 = scmp.ne.s32.totalorder %s114, %s117
    %p123 = scmp.eq.s32.totalorder %s13, 0
    %p124 = por %p122, %p123
    %p125 = scmp.ne.s32.totalorder %s114, %s117
    %p126 = scmp.eq.s32.totalorder %s18, 1
    %p127 = por %p125, %p126
    %p128 = scmp.ne.s32.totalorder %s117, %s118
    %p129 = scmp.eq.s32.totalorder %s18, 0
    %p130 = por %p128, %p129
    %p131 = scmp.ne.s32.totalorder %s117, %s118
    %p132 = scmp.eq.s32.totalorder %s19, 1
    %p133 = por %p131, %p132
    %p135 = scmp.ne.s32.totalorder %s118, %s134
    %p136 = scmp.eq.s32.totalorder %s19, 0
    %p137 = por %p135, %p136
    %s138 = ssub.s32 %s20, %s32
    %s139 = ssub.s32 %s21, %s28
    %s140 = sor.u32 %s138, %s139
    %p141 = scmp.eq.s32.totalorder %s140, 0
    %s143 = sadd.s32 %s142, 1
    %s144 = scalar_select %p141, %s142, %s143
    %p147 = pneg %p141
    %p148 = scmp.eq.s32.totalorder %s13, 1
    %p149 = por %p147, %p148
    %p150 = scmp.ne.s32.totalorder %s142, %s145
    %p151 = scmp.eq.s32.totalorder %s13, 0
    %p152 = por %p150, %p151
    %p153 = scmp.ne.s32.totalorder %s142, %s145
    %p154 = scmp.eq.s32.totalorder %s18, 1
    %p155 = por %p153, %p154
    %p156 = scmp.ne.s32.totalorder %s145, %s146
    %p157 = scmp.eq.s32.totalorder %s18, 0
    %p158 = por %p156, %p157
    %p159 = scmp.ne.s32.totalorder %s145, %s146
    %p160 = scmp.eq.s32.totalorder %s19, 1
    %p161 = por %p159, %p160
    %p163 = scmp.ne.s32.totalorder %s146, %s162
    %p164 = scmp.eq.s32.totalorder %s19, 0
    %p165 = por %p163, %p164
    %s166 = ssub.s32 %s20, %s32
    %p167 = scmp.eq.s32.totalorder %s166, 0
    %s169 = sadd.s32 %s168, 1
    %s170 = scalar_select %p167, %s168, %s169
    %p173 = pneg %p167
    %p174 = scmp.eq.s32.totalorder %s13, 1
    %p175 = por %p173, %p174
    %p176 = scmp.ne.s32.totalorder %s168, %s171
    %p177 = scmp.eq.s32.totalorder %s13, 0
    %p178 = por %p176, %p177
    %p179 = scmp.ne.s32.totalorder %s168, %s171
    %p180 = scmp.eq.s32.totalorder %s18, 1
    %p181 = por %p179, %p180
    %p182 = scmp.ne.s32.totalorder %s171, %s172
    %p183 = scmp.eq.s32.totalorder %s18, 0
    %p184 = por %p182, %p183
    %p185 = scmp.ne.s32.totalorder %s171, %s172
    %p186 = scmp.eq.s32.totalorder %s19, 1
    %p187 = por %p185, %p186
    %p189 = scmp.ne.s32.totalorder %s172, %s188
    %p190 = scmp.eq.s32.totalorder %s19, 0
    %p191 = por %p189, %p190
    %s192 = ssub.s32 %s20, %s32
    %p193 = scmp.eq.s32.totalorder %s192, 0
    %s195 = sadd.s32 %s194, 1
    %s196 = scalar_select %p193, %s194, %s195
    %p199 = pneg %p193
    %p200 = scmp.eq.s32.totalorder %s13, 1
    %p201 = por %p199, %p200
    %p202 = scmp.ne.s32.totalorder %s194, %s197
    %p203 = scmp.eq.s32.totalorder %s13, 0
    %p204 = por %p202, %p203
    %p205 = scmp.ne.s32.totalorder %s194, %s197
    %p206 = scmp.eq.s32.totalorder %s18, 1
    %p207 = por %p205, %p206
    %p208 = scmp.ne.s32.totalorder %s197, %s198
    %p209 = scmp.eq.s32.totalorder %s18, 0
    %p210 = por %p208, %p209
    %p211 = scmp.ne.s32.totalorder %s197, %s198
    %p212 = scmp.eq.s32.totalorder %s19, 1
    %p213 = por %p211, %p212
    %p215 = scmp.ne.s32.totalorder %s198, %s214
    %p216 = scmp.eq.s32.totalorder %s19, 0
    %p217 = por %p215, %p216
    %p218 = scmp.le.s32.totalorder 1, %s13
    %p219 = scmp.lt.s32.totalorder %s13, 3
    %p220 = pnand %p218, %p219
    %p221 = pneg %p220
    // Predicated region
    $region9: #{conv_pack_layer.2} parent=5 // pred_check
      _
    $region10: #{conv_pack_layer.2} parent=5 // pred_check_branch
      %223 = sbr.rel (%p220) target = $region12
    $region11: #{conv_pack_layer.2} parent=5 // pred_region
      %s224 = ssub.s32 %s13, 1
      // Predicated region
      $region13: #{conv_pack_layer.2} parent=11 // pred_check
        %p225 = pneg %p104
      $region14: #{conv_pack_layer.2} parent=11 // pred_check_branch
        %227 = sbr.rel (%p225) target = $region16
      $region15: #{conv_pack_layer.2} parent=11 // pred_region
        _
      $region16: #{conv_pack_layer.2} parent=11 // pred_fallthru
        _
      // Predicated region
      $region17: #{conv_pack_layer.2} parent=11 // pred_check
        %p228 = pneg %p130
      $region18: #{conv_pack_layer.2} parent=11 // pred_check_branch
        %230 = sbr.rel (%p228) target = $region20
      $region19: #{conv_pack_layer.2} parent=11 // pred_region
        %s231 = smul.u32 3, %s23
        %p232 = scmp.lt.s32.totalorder %s231, 2
        %s233 = scalar_select %p232, %s231, 2
        %s234 = scalar_lea.vmem %s3, %s233
        %s235 = smul.u32 3, %s23
      $region20: #{conv_pack_layer.2} parent=11 // pred_fallthru
        _
    $region12: #{conv_pack_layer.2} parent=5 // pred_fallthru
      _
    %p236 = scmp.lt.s32.totalorder %s13, 2
    // Predicated region
    $region21: #{conv_pack_layer.2} parent=5 // pred_check
      %p237 = pneg %p236
    $region22: #{conv_pack_layer.2} parent=5 // pred_check_branch
      %239 = sbr.rel (%p237) target = $region24
    $region23: #{conv_pack_layer.2} parent=5 // pred_region
      // Predicated region
      $region25: #{conv_pack_layer.2} parent=23 // pred_check
        %p240 = pneg %p47
      $region26: #{conv_pack_layer.2} parent=23 // pred_check_branch
        %242 = sbr.rel (%p240) target = $region28
      $region27: #{conv_pack_layer.2} parent=23 // pred_region
        %s243 = smul.u32 3, %s21
        %p244 = scmp.lt.s32.totalorder %s20, 1
        %s245 = scalar_select %p244, %s20, 1
        %p246 = scmp.lt.s32.totalorder %s243, 5
        %s247 = scalar_select %p246, %s243, 5
        %s248 = smul.addr %s245, 6
        %s249 = sadd.s32 %s247, %s248
        %s250 = smul.addr %s249, 4
        %s251 = scalar_lea.vmem %s0, %s250
        %s252 = smul.u32 3, %s21
      $region28: #{conv_pack_layer.2} parent=23 // pred_fallthru
        _
      // Predicated region
      $region29: #{conv_pack_layer.2} parent=23 // pred_check
        %p253 = pneg %p77
      $region30: #{conv_pack_layer.2} parent=23 // pred_check_branch
        %255 = sbr.rel (%p253) target = $region32
      $region31: #{conv_pack_layer.2} parent=23 // pred_region
        %s256 = sadd.s32 %s21, 1
        %s257 = smul.u32 3, %s256
        %p258 = scmp.lt.s32.totalorder %s20, 1
        %s259 = scalar_select %p258, %s20, 1
        %p260 = scmp.lt.s32.totalorder %s257, 5
        %s261 = scalar_select %p260, %s257, 5
        %s262 = smul.addr %s259, 6
        %s263 = sadd.s32 %s261, %s262
        %s264 = smul.addr %s263, 4
        %s265 = scalar_lea.vmem %s1, %s264
        %s266 = sadd.s32 %s21, 1
        %s267 = smul.u32 3, %s266
      $region32: #{conv_pack_layer.2} parent=23 // pred_fallthru
        _
    $region24: #{conv_pack_layer.2} parent=5 // pred_fallthru
      _
    %p268 = scmp.le.s32.totalorder 1, %s13
    %p269 = scmp.lt.s32.totalorder %s13, 3
    %p270 = pnand %p268, %p269
    %p271 = pneg %p270
    // Predicated region
    $region33: #{conv_pack_layer.2} parent=5 // pred_check
      _
    $region34: #{conv_pack_layer.2} parent=5 // pred_check_branch
      %273 = sbr.rel (%p270) target = $region36
    $region35: #{conv_pack_layer.2} parent=5 // pred_region
      %s274 = ssub.s32 %s13, 1
      %s275 = smul.u32 3, %s23
      %p276 = scmp.lt.s32.totalorder %s22, 1
      %s277 = scalar_select %p276, %s22, 1
      %p278 = scmp.lt.s32.totalorder %s275, 5
      %s279 = scalar_select %p278, %s275, 5
      %s280 = smul.addr %s277, 6
      %s281 = sadd.s32 %s279, %s280
      %s282 = smul.addr %s281, 4
      %s283 = scalar_lea.vmem %s0, %s282
      %p284 = pneg %p53
      %p285 = pneg %p50
      %s286 = sadd.s32 %s23, 1
      %s287 = smul.u32 3, %s286
      %p288 = scmp.lt.s32.totalorder %s22, 1
      %s289 = scalar_select %p288, %s22, 1
      %p290 = scmp.lt.s32.totalorder %s287, 5
      %s291 = scalar_select %p290, %s287, 5
      %s292 = smul.addr %s289, 6
      %s293 = sadd.s32 %s291, %s292
      %s294 = smul.addr %s293, 4
      %s295 = scalar_lea.vmem %s1, %s294
      %p296 = pneg %p83
      %p297 = pneg %p80
      %p298 = pneg %p104
      %p299 = pneg %p101
      %s300 = smul.u32 3, %s23
      %p301 = scmp.lt.s32.totalorder %s300, 2
      %s302 = scalar_select %p301, %s300, 2
      %s303 = scalar_lea.vmem %s3, %s302
      %p304 = pneg %p130
      %p305 = pneg %p127
      %p306 = pneg %p158
      %p307 = pneg %p155
      %s308 = smul.u32 3, %s23
      %p309 = scmp.lt.s32.totalorder %s22, 1
      %s310 = scalar_select %p309, %s22, 1
      %p311 = scmp.lt.s32.totalorder %s308, 2
      %s312 = scalar_select %p311, %s308, 2
      %s313 = smul.addr %s310, 3
      %s314 = sadd.s32 %s312, %s313
      %s315 = smul.addr %s314, 8
      %s316 = scalar_lea.vmem %s4, %s315
      %p317 = pneg %p184
      %p318 = pneg %p181
      %p319 = scmp.lt.s32.totalorder %s22, 1
      %s320 = scalar_select %p319, %s22, 1
      %s321 = smul.addr %s320, 8
      %s322 = scalar_lea.vmem %s5, %s321
      %p323 = pneg %p210
      %p324 = pneg %p207
      %p325 = scmp.lt.s32.totalorder %s22, 1
      %s326 = scalar_select %p325, %s22, 1
      %s327 = smul.addr %s326, 8
      %s328 = scalar_lea.vmem %s6, %s327
      %s329 = smul.u32 3, %s23
      %p330 = scmp.lt.s32.totalorder %s22, 1
      %s331 = scalar_select %p330, %s22, 1
      %p332 = scmp.lt.s32.totalorder %s329, 5
      %s333 = scalar_select %p332, %s329, 5
      %s334 = smul.addr %s331, 6
      %s335 = sadd.s32 %s333, %s334
      %s336 = smul.addr %s335, 4
      %s337 = scalar_lea.vmem %s0, %s336
      %s338 = smul.u32 3, %s23
      %s339 = sadd.s32 %s23, 1
      %s340 = smul.u32 3, %s339
      %p341 = scmp.lt.s32.totalorder %s22, 1
      %s342 = scalar_select %p341, %s22, 1
      %p343 = scmp.lt.s32.totalorder %s340, 5
      %s344 = scalar_select %p343, %s340, 5
      %s345 = smul.addr %s342, 6
      %s346 = sadd.s32 %s344, %s345
      %s347 = smul.addr %s346, 4
      %s348 = scalar_lea.vmem %s1, %s347
      %s349 = sadd.s32 %s23, 1
      %s350 = smul.u32 3, %s349
      %s351 = smul.u32 3, %s23
      %p352 = scmp.lt.s32.totalorder %s351, 2
      %s353 = scalar_select %p352, %s351, 2
      %s354 = scalar_lea.vmem %s3, %s353
      %s355 = smul.u32 3, %s23
      %s356 = smul.u32 3, %s23
      %p357 = scmp.lt.s32.totalorder %s22, 1
      %s358 = scalar_select %p357, %s22, 1
      %p359 = scmp.lt.s32.totalorder %s356, 2
      %s360 = scalar_select %p359, %s356, 2
      %s361 = smul.addr %s358, 3
      %s362 = sadd.s32 %s360, %s361
      %s363 = smul.addr %s362, 8
      %s364 = scalar_lea.vmem %s4, %s363
      %s365 = smul.u32 3, %s23
      %p366 = scmp.lt.s32.totalorder %s22, 1
      %s367 = scalar_select %p366, %s22, 1
      %s368 = smul.addr %s367, 8
      %s369 = scalar_lea.vmem %s5, %s368
      %p370 = scmp.lt.s32.totalorder %s22, 1
      %s371 = scalar_select %p370, %s22, 1
      %s372 = smul.addr %s371, 8
      %s373 = scalar_lea.vmem %s6, %s372
      %v374 = vld [vmem:[%s337] sm:$0xff]
      %v375 = vld [vmem:[%s337 + $0x8] sm:$0xf]
      %v376 = vld [vmem:[%s348] sm:$0xff]
      %v379 = vcombine.high %v374, %v374
      %v381 = vld [vmem:[%s2] sm:$0xff]
      %s382 = scalar_lea.vmem %s2, 8
      %v383 = vld [vmem:[%s382] sm:$0xff]
      %384 = vrot.lane.b32.xlu0 %v374, 127
      %v385 = vpop.permute.xlu0 %384
      %386 = vrot.lane.b32.xlu0 %v379, 127
      %v387 = vpop.permute.xlu0 %386
      %388 = vrot.lane.b32.xlu0 %v375, 127
      %v389 = vpop.permute.xlu0 %388
      %390 = vrot.lane.b32.xlu0 %v376, 127
      %v391 = vpop.permute.xlu0 %390
      %vm392 = vcmask 1039360
      %v393 = vsel %vm392, %v385, %v387
      %v394 = vsel %vm392, %v387, %v389
      %v395 = vsel %vm392, %v389, %v391
      %vm396 = vcmask 31744
      %v398 = vsel %vm396, %v383, 0
      %vm400 = vcmask 1043456
      %v401 = vsel %vm400, %v393, 0
      %v403 = vsel %vm400, %v394, 0
      %v405 = vsel %vm400, %v395, 0
      %407 = vmatprep.subr.mxu0 0.0
      %408 = vmatpush1.msra.mxu0 0.0
      %409 = vmatprep.subr.mxu0 0.0
      %410 = vmatpush1.msra.mxu0 0.0
      %411 = vmatprep.subr.mxu0 0.0
      %412 = vmatpush1.msra.mxu0 0.0
      %413 = vmatprep.subr.mxu0 0.0
      %414 = vmatpush1.msra.mxu0 0.0
      %415 = vmatprep.subr.mxu0 0.0
      %416 = vmatpush1.msra.mxu0 0.0
      %417 = vmatprep.subr.mxu0 0.0
      %418 = vmatpush1.msra.mxu0 0.0
      %419 = vmatprep.subr.mxu0 0.0
      %420 = vmatpush1.msra.mxu0 0.0
      %421 = vmatprep.subr.mxu0 0.0
      %422 = vmatpush1.msra.mxu0 0.0
      %423 = vmatprep.subr.mxu0 0.0
      %424 = vmatpush1.msra.mxu0 0.0
      %425 = vmatprep.subr.mxu0 0.0
      %426 = vmatpush1.msra.mxu0 0.0
      %427 = vmatprep.subr.mxu0 0.0
      %428 = vmatpush1.msra.mxu0 0.0
      %429 = vmatprep.subr.mxu0 0.0
      %430 = vmatpush1.msra.mxu0 0.0
      %431 = vmatprep.subr.mxu0 0.0
      %432 = vmatpush1.msra.mxu0 0.0
      %433 = vmatprep.subr.mxu0 0.0
      %434 = vmatpush1.msra.mxu0 0.0
      %435 = vmatprep.subr.mxu0 0.0
      %436 = vmatpush1.msra.mxu0 0.0
      %437 = vmatprep.subr.mxu0 %v403
      %438 = vmatpush1.msra.mxu0 %v401
      %439 = vmatprep.subr.mxu0 0.0
      %440 = vmatpush2.msra.mxu0 0.0
      %441 = vmatprep.subr.mxu0 0.0
      %442 = vmatpush2.msra.mxu0 0.0
      %443 = vmatprep.subr.mxu0 0.0
      %444 = vmatpush2.msra.mxu0 0.0
      %445 = vmatprep.subr.mxu0 0.0
      %446 = vmatpush2.msra.mxu0 0.0
      %447 = vmatprep.subr.mxu0 0.0
      %448 = vmatpush2.msra.mxu0 0.0
      %449 = vmatprep.subr.mxu0 0.0
      %450 = vmatpush2.msra.mxu0 0.0
      %451 = vmatprep.subr.mxu0 0.0
      %452 = vmatpush2.msra.mxu0 0.0
      %453 = vmatprep.subr.mxu0 0.0
      %454 = vmatpush2.msra.mxu0 0.0
      %455 = vmatprep.subr.mxu0 0.0
      %456 = vmatpush2.msra.mxu0 0.0
      %457 = vmatprep.subr.mxu0 0.0
      %458 = vmatpush2.msra.mxu0 0.0
      %459 = vmatprep.subr.mxu0 0.0
      %460 = vmatpush2.msra.mxu0 0.0
      %461 = vmatprep.subr.mxu0 0.0
      %462 = vmatpush2.msra.mxu0 0.0
      %463 = vmatprep.subr.mxu0 0.0
      %464 = vmatpush2.msra.mxu0 0.0
      %465 = vmatprep.subr.mxu0 0.0
      %466 = vmatpush2.msra.mxu0 0.0
      %467 = vmatprep.subr.mxu0 0.0
      %468 = vmatpush2.msra.mxu0 0.0
      %469 = vmatprep.subr.mxu0 0.0
      %470 = vmatpush2.msra.mxu0 0.0
      %471 = vmatprep.mubr.f32.mxu0 0.0
      %472 = vmatmul.mubr.f32.gmra.mxu0 %v398
      %v473 = vpop.f32.mrf.mxu0
      %v474 = vadd.f32 0.0, %v473
      %v475 = vpop.f32.mrf.mxu0
      %v476 = vadd.f32 0.0, %v475
      %477 = vdwg.mxu0
      %478 = vmatprep.subr.mxu0 0.0
      %479 = vmatpush1.msra.mxu0 0.0
      %480 = vmatprep.subr.mxu0 0.0
      %481 = vmatpush1.msra.mxu0 0.0
      %482 = vmatprep.subr.mxu0 0.0
      %483 = vmatpush1.msra.mxu0 0.0
      %484 = vmatprep.subr.mxu0 0.0
      %485 = vmatpush1.msra.mxu0 0.0
      %486 = vmatprep.subr.mxu0 0.0
      %487 = vmatpush1.msra.mxu0 0.0
      %488 = vmatprep.subr.mxu0 0.0
      %489 = vmatpush1.msra.mxu0 0.0
      %490 = vmatprep.subr.mxu0 0.0
      %491 = vmatpush1.msra.mxu0 0.0
      %492 = vmatprep.subr.mxu0 0.0
      %493 = vmatpush1.msra.mxu0 0.0
      %494 = vmatprep.subr.mxu0 0.0
      %495 = vmatpush1.msra.mxu0 0.0
      %496 = vmatprep.subr.mxu0 0.0
      %497 = vmatpush1.msra.mxu0 0.0
      %498 = vmatprep.subr.mxu0 0.0
      %499 = vmatpush1.msra.mxu0 0.0
      %500 = vmatprep.subr.mxu0 0.0
      %501 = vmatpush1.msra.mxu0 0.0
      %502 = vmatprep.subr.mxu0 0.0
      %503 = vmatpush1.msra.mxu0 0.0
      %504 = vmatprep.subr.mxu0 0.0
      %505 = vmatpush1.msra.mxu0 0.0
      %506 = vmatprep.subr.mxu0 0.0
      %507 = vmatpush1.msra.mxu0 0.0
      %508 = vmatprep.subr.mxu0 0.0
      %509 = vmatpush1.msra.mxu0 %v405
      %510 = vmatprep.subr.mxu0 0.0
      %511 = vmatpush2.msra.mxu0 0.0
      %512 = vmatprep.subr.mxu0 0.0
      %513 = vmatpush2.msra.mxu0 0.0
      %514 = vmatprep.subr.mxu0 0.0
      %515 = vmatpush2.msra.mxu0 0.0
      %516 = vmatprep.subr.mxu0 0.0
      %517 = vmatpush2.msra.mxu0 0.0
      %518 = vmatprep.subr.mxu0 0.0
      %519 = vmatpush2.msra.mxu0 0.0
      %520 = vmatprep.subr.mxu0 0.0
      %521 = vmatpush2.msra.mxu0 0.0
      %522 = vmatprep.subr.mxu0 0.0
      %523 = vmatpush2.msra.mxu0 0.0
      %524 = vmatprep.subr.mxu0 0.0
      %525 = vmatpush2.msra.mxu0 0.0
      %526 = vmatprep.subr.mxu0 0.0
      %527 = vmatpush2.msra.mxu0 0.0
      %528 = vmatprep.subr.mxu0 0.0
      %529 = vmatpush2.msra.mxu0 0.0
      %530 = vmatprep.subr.mxu0 0.0
      %531 = vmatpush2.msra.mxu0 0.0
      %532 = vmatprep.subr.mxu0 0.0
      %533 = vmatpush2.msra.mxu0 0.0
      %534 = vmatprep.subr.mxu0 0.0
      %535 = vmatpush2.msra.mxu0 0.0
      %536 = vmatprep.subr.mxu0 0.0
      %537 = vmatpush2.msra.mxu0 0.0
      %538 = vmatprep.subr.mxu0 0.0
      %539 = vmatpush2.msra.mxu0 0.0
      %540 = vmatprep.subr.mxu0 0.0
      %541 = vmatpush2.msra.mxu0 0.0
      %542 = vmatprep.mubr.f32.mxu0 0.0
      %543 = vmatmul.mubr.f32.gmra.mxu0 %v398
      %v544 = vpop.f32.mrf.mxu0
      %v545 = vadd.f32 0.0, %v544
      %v546 = vpop.f32.mrf.mxu0
      %547 = vdwg.mxu0
      %v549 = vsel %vm396, %v381, 0
      %v551 = vsel %vm400, %v374, 0
      %v553 = vsel %vm400, %v379, 0
      %v555 = vsel %vm400, %v375, 0
      %557 = vmatprep.subr.mxu0 0.0
      %558 = vmatpush1.msra.mxu0 0.0
      %559 = vmatprep.subr.mxu0 0.0
      %560 = vmatpush1.msra.mxu0 0.0
      %561 = vmatprep.subr.mxu0 0.0
      %562 = vmatpush1.msra.mxu0 0.0
      %563 = vmatprep.subr.mxu0 0.0
      %564 = vmatpush1.msra.mxu0 0.0
      %565 = vmatprep.subr.mxu0 0.0
      %566 = vmatpush1.msra.mxu0 0.0
      %567 = vmatprep.subr.mxu0 0.0
      %568 = vmatpush1.msra.mxu0 0.0
      %569 = vmatprep.subr.mxu0 0.0
      %570 = vmatpush1.msra.mxu0 0.0
      %571 = vmatprep.subr.mxu0 0.0
      %572 = vmatpush1.msra.mxu0 0.0
      %573 = vmatprep.subr.mxu0 0.0
      %574 = vmatpush1.msra.mxu0 0.0
      %575 = vmatprep.subr.mxu0 0.0
      %576 = vmatpush1.msra.mxu0 0.0
      %577 = vmatprep.subr.mxu0 0.0
      %578 = vmatpush1.msra.mxu0 0.0
      %579 = vmatprep.subr.mxu0 0.0
      %580 = vmatpush1.msra.mxu0 0.0
      %581 = vmatprep.subr.mxu0 0.0
      %582 = vmatpush1.msra.mxu0 0.0
      %583 = vmatprep.subr.mxu0 0.0
      %584 = vmatpush1.msra.mxu0 0.0
      %585 = vmatprep.subr.mxu0 0.0
      %586 = vmatpush1.msra.mxu0 0.0
      %587 = vmatprep.subr.mxu0 %v553
      %588 = vmatpush1.msra.mxu0 %v551
      %589 = vmatprep.subr.mxu0 0.0
      %590 = vmatpush2.msra.mxu0 0.0
      %591 = vmatprep.subr.mxu0 0.0
      %592 = vmatpush2.msra.mxu0 0.0
      %593 = vmatprep.subr.mxu0 0.0
      %594 = vmatpush2.msra.mxu0 0.0
      %595 = vmatprep.subr.mxu0 0.0
      %596 = vmatpush2.msra.mxu0 0.0
      %597 = vmatprep.subr.mxu0 0.0
      %598 = vmatpush2.msra.mxu0 0.0
      %599 = vmatprep.subr.mxu0 0.0
      %600 = vmatpush2.msra.mxu0 0.0
      %601 = vmatprep.subr.mxu0 0.0
      %602 = vmatpush2.msra.mxu0 0.0
      %603 = vmatprep.subr.mxu0 0.0
      %604 = vmatpush2.msra.mxu0 0.0
      %605 = vmatprep.subr.mxu0 0.0
      %606 = vmatpush2.msra.mxu0 0.0
      %607 = vmatprep.subr.mxu0 0.0
      %608 = vmatpush2.msra.mxu0 0.0
      %609 = vmatprep.subr.mxu0 0.0
      %610 = vmatpush2.msra.mxu0 0.0
      %611 = vmatprep.subr.mxu0 0.0
      %612 = vmatpush2.msra.mxu0 0.0
      %613 = vmatprep.subr.mxu0 0.0
      %614 = vmatpush2.msra.mxu0 0.0
      %615 = vmatprep.subr.mxu0 0.0
      %616 = vmatpush2.msra.mxu0 0.0
      %617 = vmatprep.subr.mxu0 0.0
      %618 = vmatpush2.msra.mxu0 0.0
      %619 = vmatprep.subr.mxu0 0.0
      %620 = vmatpush2.msra.mxu0 0.0
      %621 = vmatprep.mubr.f32.mxu0 0.0
      %622 = vmatmul.mubr.f32.gmra.mxu0 %v549
      %v623 = vpop.f32.mrf.mxu0
      %v624 = vadd.f32 %v474, %v623
      %v625 = vpop.f32.mrf.mxu0
      %v626 = vadd.f32 %v476, %v625
      %627 = vdwg.mxu0
      %628 = vmatprep.subr.mxu0 0.0
      %629 = vmatpush1.msra.mxu0 0.0
      %630 = vmatprep.subr.mxu0 0.0
      %631 = vmatpush1.msra.mxu0 0.0
      %632 = vmatprep.subr.mxu0 0.0
      %633 = vmatpush1.msra.mxu0 0.0
      %634 = vmatprep.subr.mxu0 0.0
      %635 = vmatpush1.msra.mxu0 0.0
      %636 = vmatprep.subr.mxu0 0.0
      %637 = vmatpush1.msra.mxu0 0.0
      %638 = vmatprep.subr.mxu0 0.0
      %639 = vmatpush1.msra.mxu0 0.0
      %640 = vmatprep.subr.mxu0 0.0
      %641 = vmatpush1.msra.mxu0 0.0
      %642 = vmatprep.subr.mxu0 0.0
      %643 = vmatpush1.msra.mxu0 0.0
      %644 = vmatprep.subr.mxu0 0.0
      %645 = vmatpush1.msra.mxu0 0.0
      %646 = vmatprep.subr.mxu0 0.0
      %647 = vmatpush1.msra.mxu0 0.0
      %648 = vmatprep.subr.mxu0 0.0
      %649 = vmatpush1.msra.mxu0 0.0
      %650 = vmatprep.subr.mxu0 0.0
      %651 = vmatpush1.msra.mxu0 0.0
      %652 = vmatprep.subr.mxu0 0.0
      %653 = vmatpush1.msra.mxu0 0.0
      %654 = vmatprep.subr.mxu0 0.0
      %655 = vmatpush1.msra.mxu0 0.0
      %656 = vmatprep.subr.mxu0 0.0
      %657 = vmatpush1.msra.mxu0 0.0
      %658 = vmatprep.subr.mxu0 0.0
      %659 = vmatpush1.msra.mxu0 %v555
      %660 = vmatprep.subr.mxu0 0.0
      %661 = vmatpush2.msra.mxu0 0.0
      %662 = vmatprep.subr.mxu0 0.0
      %663 = vmatpush2.msra.mxu0 0.0
      %664 = vmatprep.subr.mxu0 0.0
      %665 = vmatpush2.msra.mxu0 0.0
      %666 = vmatprep.subr.mxu0 0.0
      %667 = vmatpush2.msra.mxu0 0.0
      %668 = vmatprep.subr.mxu0 0.0
      %669 = vmatpush2.msra.mxu0 0.0
      %670 = vmatprep.subr.mxu0 0.0
      %671 = vmatpush2.msra.mxu0 0.0
      %672 = vmatprep.subr.mxu0 0.0
      %673 = vmatpush2.msra.mxu0 0.0
      %674 = vmatprep.subr.mxu0 0.0
      %675 = vmatpush2.msra.mxu0 0.0
      %676 = vmatprep.subr.mxu0 0.0
      %677 = vmatpush2.msra.mxu0 0.0
      %678 = vmatprep.subr.mxu0 0.0
      %679 = vmatpush2.msra.mxu0 0.0
      %680 = vmatprep.subr.mxu0 0.0
      %681 = vmatpush2.msra.mxu0 0.0
      %682 = vmatprep.subr.mxu0 0.0
      %683 = vmatpush2.msra.mxu0 0.0
      %684 = vmatprep.subr.mxu0 0.0
      %685 = vmatpush2.msra.mxu0 0.0
      %686 = vmatprep.subr.mxu0 0.0
      %687 = vmatpush2.msra.mxu0 0.0
      %688 = vmatprep.subr.mxu0 0.0
      %689 = vmatpush2.msra.mxu0 0.0
      %690 = vmatprep.subr.mxu0 0.0
      %691 = vmatpush2.msra.mxu0 0.0
      %692 = vmatprep.mubr.f32.mxu0 0.0
      %693 = vmatmul.mubr.f32.gmra.mxu0 %v549
      %v694 = vpop.f32.mrf.mxu0
      %v695 = vadd.f32 %v545, %v694
      %v696 = vpop.f32.mrf.mxu0
      %697 = vdwg.mxu0
      %s698 = scalar_lea.vmem %s2, 16
      %v699 = vld [vmem:[%s698] sm:$0xff]
      %700 = vrot.lane.b32.xlu0 %v374, 126
      %v701 = vpop.permute.xlu0 %700
      %702 = vrot.lane.b32.xlu0 %v379, 126
      %v703 = vpop.permute.xlu0 %702
      %704 = vrot.lane.b32.xlu0 %v375, 126
      %v705 = vpop.permute.xlu0 %704
      %706 = vrot.lane.b32.xlu0 %v376, 126
      %v707 = vpop.permute.xlu0 %706
      %vm708 = vcmask 1031168
      %v709 = vsel %vm708, %v701, %v703
      %v710 = vsel %vm708, %v703, %v705
      %v711 = vsel %vm708, %v705, %v707
      %v713 = vsel %vm396, %v699, 0
      %v715 = vsel %vm400, %v709, 0
      %v717 = vsel %vm400, %v710, 0
      %v719 = vsel %vm400, %v711, 0
      %721 = vmatprep.subr.mxu0 0.0
      %722 = vmatpush1.msra.mxu0 0.0
      %723 = vmatprep.subr.mxu0 0.0
      %724 = vmatpush1.msra.mxu0 0.0
      %725 = vmatprep.subr.mxu0 0.0
      %726 = vmatpush1.msra.mxu0 0.0
      %727 = vmatprep.subr.mxu0 0.0
      %728 = vmatpush1.msra.mxu0 0.0
      %729 = vmatprep.subr.mxu0 0.0
      %730 = vmatpush1.msra.mxu0 0.0
      %731 = vmatprep.subr.mxu0 0.0
      %732 = vmatpush1.msra.mxu0 0.0
      %733 = vmatprep.subr.mxu0 0.0
      %734 = vmatpush1.msra.mxu0 0.0
      %735 = vmatprep.subr.mxu0 0.0
      %736 = vmatpush1.msra.mxu0 0.0
      %737 = vmatprep.subr.mxu0 0.0
      %738 = vmatpush1.msra.mxu0 0.0
      %739 = vmatprep.subr.mxu0 0.0
      %740 = vmatpush1.msra.mxu0 0.0
      %741 = vmatprep.subr.mxu0 0.0
      %742 = vmatpush1.msra.mxu0 0.0
      %743 = vmatprep.subr.mxu0 0.0
      %744 = vmatpush1.msra.mxu0 0.0
      %745 = vmatprep.subr.mxu0 0.0
      %746 = vmatpush1.msra.mxu0 0.0
      %747 = vmatprep.subr.mxu0 0.0
      %748 = vmatpush1.msra.mxu0 0.0
      %749 = vmatprep.subr.mxu0 0.0
      %750 = vmatpush1.msra.mxu0 0.0
      %751 = vmatprep.subr.mxu0 %v717
      %752 = vmatpush1.msra.mxu0 %v715
      %753 = vmatprep.subr.mxu0 0.0
      %754 = vmatpush2.msra.mxu0 0.0
      %755 = vmatprep.subr.mxu0 0.0
      %756 = vmatpush2.msra.mxu0 0.0
      %757 = vmatprep.subr.mxu0 0.0
      %758 = vmatpush2.msra.mxu0 0.0
      %759 = vmatprep.subr.mxu0 0.0
      %760 = vmatpush2.msra.mxu0 0.0
      %761 = vmatprep.subr.mxu0 0.0
      %762 = vmatpush2.msra.mxu0 0.0
      %763 = vmatprep.subr.mxu0 0.0
      %764 = vmatpush2.msra.mxu0 0.0
      %765 = vmatprep.subr.mxu0 0.0
      %766 = vmatpush2.msra.mxu0 0.0
      %767 = vmatprep.subr.mxu0 0.0
      %768 = vmatpush2.msra.mxu0 0.0
      %769 = vmatprep.subr.mxu0 0.0
      %770 = vmatpush2.msra.mxu0 0.0
      %771 = vmatprep.subr.mxu0 0.0
      %772 = vmatpush2.msra.mxu0 0.0
      %773 = vmatprep.subr.mxu0 0.0
      %774 = vmatpush2.msra.mxu0 0.0
      %775 = vmatprep.subr.mxu0 0.0
      %776 = vmatpush2.msra.mxu0 0.0
      %777 = vmatprep.subr.mxu0 0.0
      %778 = vmatpush2.msra.mxu0 0.0
      %779 = vmatprep.subr.mxu0 0.0
      %780 = vmatpush2.msra.mxu0 0.0
      %781 = vmatprep.subr.mxu0 0.0
      %782 = vmatpush2.msra.mxu0 0.0
      %783 = vmatprep.subr.mxu0 0.0
      %784 = vmatpush2.msra.mxu0 0.0
      %785 = vmatprep.mubr.f32.mxu0 0.0
      %786 = vmatmul.mubr.f32.gmra.mxu0 %v713
      %v787 = vpop.f32.mrf.mxu0
      %v788 = vadd.f32 0.0, %v787
      %v789 = vpop.f32.mrf.mxu0
      %v790 = vadd.f32 0.0, %v789
      %791 = vdwg.mxu0
      %792 = vmatprep.subr.mxu0 0.0
      %793 = vmatpush1.msra.mxu0 0.0
      %794 = vmatprep.subr.mxu0 0.0
      %795 = vmatpush1.msra.mxu0 0.0
      %796 = vmatprep.subr.mxu0 0.0
      %797 = vmatpush1.msra.mxu0 0.0
      %798 = vmatprep.subr.mxu0 0.0
      %799 = vmatpush1.msra.mxu0 0.0
      %800 = vmatprep.subr.mxu0 0.0
      %801 = vmatpush1.msra.mxu0 0.0
      %802 = vmatprep.subr.mxu0 0.0
      %803 = vmatpush1.msra.mxu0 0.0
      %804 = vmatprep.subr.mxu0 0.0
      %805 = vmatpush1.msra.mxu0 0.0
      %806 = vmatprep.subr.mxu0 0.0
      %807 = vmatpush1.msra.mxu0 0.0
      %808 = vmatprep.subr.mxu0 0.0
      %809 = vmatpush1.msra.mxu0 0.0
      %810 = vmatprep.subr.mxu0 0.0
      %811 = vmatpush1.msra.mxu0 0.0
      %812 = vmatprep.subr.mxu0 0.0
      %813 = vmatpush1.msra.mxu0 0.0
      %814 = vmatprep.subr.mxu0 0.0
      %815 = vmatpush1.msra.mxu0 0.0
      %816 = vmatprep.subr.mxu0 0.0
      %817 = vmatpush1.msra.mxu0 0.0
      %818 = vmatprep.subr.mxu0 0.0
      %819 = vmatpush1.msra.mxu0 0.0
      %820 = vmatprep.subr.mxu0 0.0
      %821 = vmatpush1.msra.mxu0 0.0
      %822 = vmatprep.subr.mxu0 0.0
      %823 = vmatpush1.msra.mxu0 %v719
      %824 = vmatprep.subr.mxu0 0.0
      %825 = vmatpush2.msra.mxu0 0.0
      %826 = vmatprep.subr.mxu0 0.0
      %827 = vmatpush2.msra.mxu0 0.0
      %828 = vmatprep.subr.mxu0 0.0
      %829 = vmatpush2.msra.mxu0 0.0
      %830 = vmatprep.subr.mxu0 0.0
      %831 = vmatpush2.msra.mxu0 0.0
      %832 = vmatprep.subr.mxu0 0.0
      %833 = vmatpush2.msra.mxu0 0.0
      %834 = vmatprep.subr.mxu0 0.0
      %835 = vmatpush2.msra.mxu0 0.0
      %836 = vmatprep.subr.mxu0 0.0
      %837 = vmatpush2.msra.mxu0 0.0
      %838 = vmatprep.subr.mxu0 0.0
      %839 = vmatpush2.msra.mxu0 0.0
      %840 = vmatprep.subr.mxu0 0.0
      %841 = vmatpush2.msra.mxu0 0.0
      %842 = vmatprep.subr.mxu0 0.0
      %843 = vmatpush2.msra.mxu0 0.0
      %844 = vmatprep.subr.mxu0 0.0
      %845 = vmatpush2.msra.mxu0 0.0
      %846 = vmatprep.subr.mxu0 0.0
      %847 = vmatpush2.msra.mxu0 0.0
      %848 = vmatprep.subr.mxu0 0.0
      %849 = vmatpush2.msra.mxu0 0.0
      %850 = vmatprep.subr.mxu0 0.0
      %851 = vmatpush2.msra.mxu0 0.0
      %852 = vmatprep.subr.mxu0 0.0
      %853 = vmatpush2.msra.mxu0 0.0
      %854 = vmatprep.subr.mxu0 0.0
      %855 = vmatpush2.msra.mxu0 0.0
      %856 = vmatprep.mubr.f32.mxu0 0.0
      %857 = vmatmul.mubr.f32.gmra.mxu0 %v713
      %v858 = vpop.f32.mrf.mxu0
      %v859 = vadd.f32 0.0, %v858
      %v860 = vpop.f32.mrf.mxu0
      %861 = vdwg.mxu0
      %v862 = vadd.f32 %v624, %v788
      %v863 = vadd.f32 %v626, %v790
      %v864 = vadd.f32 %v695, %v859
      %s865 = scalar_lea.vmem %s2, 24
      %v866 = vld [vmem:[%s865] sm:$0xff]
      %867 = vrot.lane.b32.xlu0 %v374, 110
      %v868 = vpop.permute.xlu0 %867
      %869 = vrot.lane.b32.xlu0 %v379, 110
      %v870 = vpop.permute.xlu0 %869
      %871 = vrot.lane.b32.xlu0 %v375, 110
      %v872 = vpop.permute.xlu0 %871
      %873 = vrot.lane.b32.xlu0 %v376, 110
      %v874 = vpop.permute.xlu0 %873
      %vm875 = vcmask 900096
      %v876 = vsel %vm875, %v868, %v870
      %v877 = vsel %vm875, %v870, %v872
      %v878 = vsel %vm875, %v872, %v874
      %v880 = vsel %vm396, %v866, 0
      %v882 = vsel %vm400, %v876, 0
      %v884 = vsel %vm400, %v877, 0
      %v886 = vsel %vm400, %v878, 0
      %888 = vmatprep.subr.mxu0 0.0
      %889 = vmatpush1.msra.mxu0 0.0
      %890 = vmatprep.subr.mxu0 0.0
      %891 = vmatpush1.msra.mxu0 0.0
      %892 = vmatprep.subr.mxu0 0.0
      %893 = vmatpush1.msra.mxu0 0.0
      %894 = vmatprep.subr.mxu0 0.0
      %895 = vmatpush1.msra.mxu0 0.0
      %896 = vmatprep.subr.mxu0 0.0
      %897 = vmatpush1.msra.mxu0 0.0
      %898 = vmatprep.subr.mxu0 0.0
      %899 = vmatpush1.msra.mxu0 0.0
      %900 = vmatprep.subr.mxu0 0.0
      %901 = vmatpush1.msra.mxu0 0.0
      %902 = vmatprep.subr.mxu0 0.0
      %903 = vmatpush1.msra.mxu0 0.0
      %904 = vmatprep.subr.mxu0 0.0
      %905 = vmatpush1.msra.mxu0 0.0
      %906 = vmatprep.subr.mxu0 0.0
      %907 = vmatpush1.msra.mxu0 0.0
      %908 = vmatprep.subr.mxu0 0.0
      %909 = vmatpush1.msra.mxu0 0.0
      %910 = vmatprep.subr.mxu0 0.0
      %911 = vmatpush1.msra.mxu0 0.0
      %912 = vmatprep.subr.mxu0 0.0
      %913 = vmatpush1.msra.mxu0 0.0
      %914 = vmatprep.subr.mxu0 0.0
      %915 = vmatpush1.msra.mxu0 0.0
      %916 = vmatprep.subr.mxu0 0.0
      %917 = vmatpush1.msra.mxu0 0.0
      %918 = vmatprep.subr.mxu0 %v884
      %919 = vmatpush1.msra.mxu0 %v882
      %920 = vmatprep.subr.mxu0 0.0
      %921 = vmatpush2.msra.mxu0 0.0
      %922 = vmatprep.subr.mxu0 0.0
      %923 = vmatpush2.msra.mxu0 0.0
      %924 = vmatprep.subr.mxu0 0.0
      %925 = vmatpush2.msra.mxu0 0.0
      %926 = vmatprep.subr.mxu0 0.0
      %927 = vmatpush2.msra.mxu0 0.0
      %928 = vmatprep.subr.mxu0 0.0
      %929 = vmatpush2.msra.mxu0 0.0
      %930 = vmatprep.subr.mxu0 0.0
      %931 = vmatpush2.msra.mxu0 0.0
      %932 = vmatprep.subr.mxu0 0.0
      %933 = vmatpush2.msra.mxu0 0.0
      %934 = vmatprep.subr.mxu0 0.0
      %935 = vmatpush2.msra.mxu0 0.0
      %936 = vmatprep.subr.mxu0 0.0
      %937 = vmatpush2.msra.mxu0 0.0
      %938 = vmatprep.subr.mxu0 0.0
      %939 = vmatpush2.msra.mxu0 0.0
      %940 = vmatprep.subr.mxu0 0.0
      %941 = vmatpush2.msra.mxu0 0.0
      %942 = vmatprep.subr.mxu0 0.0
      %943 = vmatpush2.msra.mxu0 0.0
      %944 = vmatprep.subr.mxu0 0.0
      %945 = vmatpush2.msra.mxu0 0.0
      %946 = vmatprep.subr.mxu0 0.0
      %947 = vmatpush2.msra.mxu0 0.0
      %948 = vmatprep.subr.mxu0 0.0
      %949 = vmatpush2.msra.mxu0 0.0
      %950 = vmatprep.subr.mxu0 0.0
      %951 = vmatpush2.msra.mxu0 0.0
      %952 = vmatprep.mubr.f32.mxu0 0.0
      %953 = vmatmul.mubr.f32.gmra.mxu0 %v880
      %v954 = vpop.f32.mrf.mxu0
      %v955 = vadd.f32 0.0, %v954
      %v956 = vpop.f32.mrf.mxu0
      %v957 = vadd.f32 0.0, %v956
      %958 = vdwg.mxu0
      %959 = vmatprep.subr.mxu0 0.0
      %960 = vmatpush1.msra.mxu0 0.0
      %961 = vmatprep.subr.mxu0 0.0
      %962 = vmatpush1.msra.mxu0 0.0
      %963 = vmatprep.subr.mxu0 0.0
      %964 = vmatpush1.msra.mxu0 0.0
      %965 = vmatprep.subr.mxu0 0.0
      %966 = vmatpush1.msra.mxu0 0.0
      %967 = vmatprep.subr.mxu0 0.0
      %968 = vmatpush1.msra.mxu0 0.0
      %969 = vmatprep.subr.mxu0 0.0
      %970 = vmatpush1.msra.mxu0 0.0
      %971 = vmatprep.subr.mxu0 0.0
      %972 = vmatpush1.msra.mxu0 0.0
      %973 = vmatprep.subr.mxu0 0.0
      %974 = vmatpush1.msra.mxu0 0.0
      %975 = vmatprep.subr.mxu0 0.0
      %976 = vmatpush1.msra.mxu0 0.0
      %977 = vmatprep.subr.mxu0 0.0
      %978 = vmatpush1.msra.mxu0 0.0
      %979 = vmatprep.subr.mxu0 0.0
      %980 = vmatpush1.msra.mxu0 0.0
      %981 = vmatprep.subr.mxu0 0.0
      %982 = vmatpush1.msra.mxu0 0.0
      %983 = vmatprep.subr.mxu0 0.0
      %984 = vmatpush1.msra.mxu0 0.0
      %985 = vmatprep.subr.mxu0 0.0
      %986 = vmatpush1.msra.mxu0 0.0
      %987 = vmatprep.subr.mxu0 0.0
      %988 = vmatpush1.msra.mxu0 0.0
      %989 = vmatprep.subr.mxu0 0.0
      %990 = vmatpush1.msra.mxu0 %v886
      %991 = vmatprep.subr.mxu0 0.0
      %992 = vmatpush2.msra.mxu0 0.0
      %993 = vmatprep.subr.mxu0 0.0
      %994 = vmatpush2.msra.mxu0 0.0
      %995 = vmatprep.subr.mxu0 0.0
      %996 = vmatpush2.msra.mxu0 0.0
      %997 = vmatprep.subr.mxu0 0.0
      %998 = vmatpush2.msra.mxu0 0.0
      %999 = vmatprep.subr.mxu0 0.0
      %1000 = vmatpush2.msra.mxu0 0.0
      %1001 = vmatprep.subr.mxu0 0.0
      %1002 = vmatpush2.msra.mxu0 0.0
      %1003 = vmatprep.subr.mxu0 0.0
      %1004 = vmatpush2.msra.mxu0 0.0
      %1005 = vmatprep.subr.mxu0 0.0
      %1006 = vmatpush2.msra.mxu0 0.0
      %1007 = vmatprep.subr.mxu0 0.0
      %1008 = vmatpush2.msra.mxu0 0.0
      %1009 = vmatprep.subr.mxu0 0.0
      %1010 = vmatpush2.msra.mxu0 0.0
      %1011 = vmatprep.subr.mxu0 0.0
      %1012 = vmatpush2.msra.mxu0 0.0
      %1013 = vmatprep.subr.mxu0 0.0
      %1014 = vmatpush2.msra.mxu0 0.0
      %1015 = vmatprep.subr.mxu0 0.0
      %1016 = vmatpush2.msra.mxu0 0.0
      %1017 = vmatprep.subr.mxu0 0.0
      %1018 = vmatpush2.msra.mxu0 0.0
      %1019 = vmatprep.subr.mxu0 0.0
      %1020 = vmatpush2.msra.mxu0 0.0
      %1021 = vmatprep.subr.mxu0 0.0
      %1022 = vmatpush2.msra.mxu0 0.0
      %1023 = vmatprep.mubr.f32.mxu0 0.0
      %1024 = vmatmul.mubr.f32.gmra.mxu0 %v880
      %v1025 = vpop.f32.mrf.mxu0
      %v1026 = vadd.f32 0.0, %v1025
      %v1027 = vpop.f32.mrf.mxu0
      %1028 = vdwg.mxu0
      %v1029 = vadd.f32 %v862, %v955
      %v1030 = vadd.f32 %v863, %v957
      %v1031 = vadd.f32 %v864, %v1026
      %s1032 = scalar_lea.vmem %s2, 32
      %v1033 = vld [vmem:[%s1032] sm:$0xff]
      %1034 = vrot.lane.b32.xlu0 %v374, 109
      %v1035 = vpop.permute.xlu0 %1034
      %1036 = vrot.lane.b32.xlu0 %v379, 109
      %v1037 = vpop.permute.xlu0 %1036
      %1038 = vrot.lane.b32.xlu0 %v375, 109
      %v1039 = vpop.permute.xlu0 %1038
      %1040 = vrot.lane.b32.xlu0 %v376, 109
      %v1041 = vpop.permute.xlu0 %1040
      %vm1042 = vcmask 891904
      %v1043 = vsel %vm1042, %v1035, %v1037
      %v1044 = vsel %vm1042, %v1037, %v1039
      %v1045 = vsel %vm1042, %v1039, %v1041
      %v1047 = vsel %vm396, %v1033, 0
      %v1049 = vsel %vm400, %v1043, 0
      %v1051 = vsel %vm400, %v1044, 0
      %v1053 = vsel %vm400, %v1045, 0
      %1055 = vmatprep.subr.mxu0 0.0
      %1056 = vmatpush1.msra.mxu0 0.0
      %1057 = vmatprep.subr.mxu0 0.0
      %1058 = vmatpush1.msra.mxu0 0.0
      %1059 = vmatprep.subr.mxu0 0.0
      %1060 = vmatpush1.msra.mxu0 0.0
      %1061 = vmatprep.subr.mxu0 0.0
      %1062 = vmatpush1.msra.mxu0 0.0
      %1063 = vmatprep.subr.mxu0 0.0
      %1064 = vmatpush1.msra.mxu0 0.0
      %1065 = vmatprep.subr.mxu0 0.0
      %1066 = vmatpush1.msra.mxu0 0.0
      %1067 = vmatprep.subr.mxu0 0.0
      %1068 = vmatpush1.msra.mxu0 0.0
      %1069 = vmatprep.subr.mxu0 0.0
      %1070 = vmatpush1.msra.mxu0 0.0
      %1071 = vmatprep.subr.mxu0 0.0
      %1072 = vmatpush1.msra.mxu0 0.0
      %1073 = vmatprep.subr.mxu0 0.0
      %1074 = vmatpush1.msra.mxu0 0.0
      %1075 = vmatprep.subr.mxu0 0.0
      %1076 = vmatpush1.msra.mxu0 0.0
      %1077 = vmatprep.subr.mxu0 0.0
      %1078 = vmatpush1.msra.mxu0 0.0
      %1079 = vmatprep.subr.mxu0 0.0
      %1080 = vmatpush1.msra.mxu0 0.0
      %1081 = vmatprep.subr.mxu0 0.0
      %1082 = vmatpush1.msra.mxu0 0.0
      %1083 = vmatprep.subr.mxu0 0.0
      %1084 = vmatpush1.msra.mxu0 0.0
      %1085 = vmatprep.subr.mxu0 %v1051
      %1086 = vmatpush1.msra.mxu0 %v1049
      %1087 = vmatprep.subr.mxu0 0.0
      %1088 = vmatpush2.msra.mxu0 0.0
      %1089 = vmatprep.subr.mxu0 0.0
      %1090 = vmatpush2.msra.mxu0 0.0
      %1091 = vmatprep.subr.mxu0 0.0
      %1092 = vmatpush2.msra.mxu0 0.0
      %1093 = vmatprep.subr.mxu0 0.0
      %1094 = vmatpush2.msra.mxu0 0.0
      %1095 = vmatprep.subr.mxu0 0.0
      %1096 = vmatpush2.msra.mxu0 0.0
      %1097 = vmatprep.subr.mxu0 0.0
      %1098 = vmatpush2.msra.mxu0 0.0
      %1099 = vmatprep.subr.mxu0 0.0
      %1100 = vmatpush2.msra.mxu0 0.0
      %1101 = vmatprep.subr.mxu0 0.0
      %1102 = vmatpush2.msra.mxu0 0.0
      %1103 = vmatprep.subr.mxu0 0.0
      %1104 = vmatpush2.msra.mxu0 0.0
      %1105 = vmatprep.subr.mxu0 0.0
      %1106 = vmatpush2.msra.mxu0 0.0
      %1107 = vmatprep.subr.mxu0 0.0
      %1108 = vmatpush2.msra.mxu0 0.0
      %1109 = vmatprep.subr.mxu0 0.0
      %1110 = vmatpush2.msra.mxu0 0.0
      %1111 = vmatprep.subr.mxu0 0.0
      %1112 = vmatpush2.msra.mxu0 0.0
      %1113 = vmatprep.subr.mxu0 0.0
      %1114 = vmatpush2.msra.mxu0 0.0
      %1115 = vmatprep.subr.mxu0 0.0
      %1116 = vmatpush2.msra.mxu0 0.0
      %1117 = vmatprep.subr.mxu0 0.0
      %1118 = vmatpush2.msra.mxu0 0.0
      %1119 = vmatprep.mubr.f32.mxu0 0.0
      %1120 = vmatmul.mubr.f32.gmra.mxu0 %v1047
      %v1121 = vpop.f32.mrf.mxu0
      %v1122 = vadd.f32 0.0, %v1121
      %v1123 = vpop.f32.mrf.mxu0
      %v1124 = vadd.f32 0.0, %v1123
      %1125 = vdwg.mxu0
      %1126 = vmatprep.subr.mxu0 0.0
      %1127 = vmatpush1.msra.mxu0 0.0
      %1128 = vmatprep.subr.mxu0 0.0
      %1129 = vmatpush1.msra.mxu0 0.0
      %1130 = vmatprep.subr.mxu0 0.0
      %1131 = vmatpush1.msra.mxu0 0.0
      %1132 = vmatprep.subr.mxu0 0.0
      %1133 = vmatpush1.msra.mxu0 0.0
      %1134 = vmatprep.subr.mxu0 0.0
      %1135 = vmatpush1.msra.mxu0 0.0
      %1136 = vmatprep.subr.mxu0 0.0
      %1137 = vmatpush1.msra.mxu0 0.0
      %1138 = vmatprep.subr.mxu0 0.0
      %1139 = vmatpush1.msra.mxu0 0.0
      %1140 = vmatprep.subr.mxu0 0.0
      %1141 = vmatpush1.msra.mxu0 0.0
      %1142 = vmatprep.subr.mxu0 0.0
      %1143 = vmatpush1.msra.mxu0 0.0
      %1144 = vmatprep.subr.mxu0 0.0
      %1145 = vmatpush1.msra.mxu0 0.0
      %1146 = vmatprep.subr.mxu0 0.0
      %1147 = vmatpush1.msra.mxu0 0.0
      %1148 = vmatprep.subr.mxu0 0.0
      %1149 = vmatpush1.msra.mxu0 0.0
      %1150 = vmatprep.subr.mxu0 0.0
      %1151 = vmatpush1.msra.mxu0 0.0
      %1152 = vmatprep.subr.mxu0 0.0
      %1153 = vmatpush1.msra.mxu0 0.0
      %1154 = vmatprep.subr.mxu0 0.0
      %1155 = vmatpush1.msra.mxu0 0.0
      %1156 = vmatprep.subr.mxu0 0.0
      %1157 = vmatpush1.msra.mxu0 %v1053
      %1158 = vmatprep.subr.mxu0 0.0
      %1159 = vmatpush2.msra.mxu0 0.0
      %1160 = vmatprep.subr.mxu0 0.0
      %1161 = vmatpush2.msra.mxu0 0.0
      %1162 = vmatprep.subr.mxu0 0.0
      %1163 = vmatpush2.msra.mxu0 0.0
      %1164 = vmatprep.subr.mxu0 0.0
      %1165 = vmatpush2.msra.mxu0 0.0
      %1166 = vmatprep.subr.mxu0 0.0
      %1167 = vmatpush2.msra.mxu0 0.0
      %1168 = vmatprep.subr.mxu0 0.0
      %1169 = vmatpush2.msra.mxu0 0.0
      %1170 = vmatprep.subr.mxu0 0.0
      %1171 = vmatpush2.msra.mxu0 0.0
      %1172 = vmatprep.subr.mxu0 0.0
      %1173 = vmatpush2.msra.mxu0 0.0
      %1174 = vmatprep.subr.mxu0 0.0
      %1175 = vmatpush2.msra.mxu0 0.0
      %1176 = vmatprep.subr.mxu0 0.0
      %1177 = vmatpush2.msra.mxu0 0.0
      %1178 = vmatprep.subr.mxu0 0.0
      %1179 = vmatpush2.msra.mxu0 0.0
      %1180 = vmatprep.subr.mxu0 0.0
      %1181 = vmatpush2.msra.mxu0 0.0
      %1182 = vmatprep.subr.mxu0 0.0
      %1183 = vmatpush2.msra.mxu0 0.0
      %1184 = vmatprep.subr.mxu0 0.0
      %1185 = vmatpush2.msra.mxu0 0.0
      %1186 = vmatprep.subr.mxu0 0.0
      %1187 = vmatpush2.msra.mxu0 0.0
      %1188 = vmatprep.subr.mxu0 0.0
      %1189 = vmatpush2.msra.mxu0 0.0
      %1190 = vmatprep.mubr.f32.mxu0 0.0
      %1191 = vmatmul.mubr.f32.gmra.mxu0 %v1047
      %v1192 = vpop.f32.mrf.mxu0
      %v1193 = vadd.f32 0.0, %v1192
      %v1194 = vpop.f32.mrf.mxu0
      %1195 = vdwg.mxu0
      %v1196 = vadd.f32 %v1029, %v1122
      %v1197 = vadd.f32 %v1030, %v1124
      %v1198 = vadd.f32 %v1031, %v1193
      %s1199 = scalar_lea.vmem %s2, 40
      %v1200 = vld [vmem:[%s1199] sm:$0xff]
      %1201 = vrot.lane.b32.xlu0 %v374, 108
      %v1202 = vpop.permute.xlu0 %1201
      %1203 = vrot.lane.b32.xlu0 %v379, 108
      %v1204 = vpop.permute.xlu0 %1203
      %1205 = vrot.lane.b32.xlu0 %v375, 108
      %v1206 = vpop.permute.xlu0 %1205
      %1207 = vrot.lane.b32.xlu0 %v376, 108
      %v1208 = vpop.permute.xlu0 %1207
      %vm1209 = vcmask 883712
      %v1210 = vsel %vm1209, %v1202, %v1204
      %v1211 = vsel %vm1209, %v1204, %v1206
      %v1212 = vsel %vm1209, %v1206, %v1208
      %v1214 = vsel %vm396, %v1200, 0
      %v1216 = vsel %vm400, %v1210, 0
      %v1218 = vsel %vm400, %v1211, 0
      %v1220 = vsel %vm400, %v1212, 0
      %1222 = vmatprep.subr.mxu0 0.0
      %1223 = vmatpush1.msra.mxu0 0.0
      %1224 = vmatprep.subr.mxu0 0.0
      %1225 = vmatpush1.msra.mxu0 0.0
      %1226 = vmatprep.subr.mxu0 0.0
      %1227 = vmatpush1.msra.mxu0 0.0
      %1228 = vmatprep.subr.mxu0 0.0
      %1229 = vmatpush1.msra.mxu0 0.0
      %1230 = vmatprep.subr.mxu0 0.0
      %1231 = vmatpush1.msra.mxu0 0.0
      %1232 = vmatprep.subr.mxu0 0.0
      %1233 = vmatpush1.msra.mxu0 0.0
      %1234 = vmatprep.subr.mxu0 0.0
      %1235 = vmatpush1.msra.mxu0 0.0
      %1236 = vmatprep.subr.mxu0 0.0
      %1237 = vmatpush1.msra.mxu0 0.0
      %1238 = vmatprep.subr.mxu0 0.0
      %1239 = vmatpush1.msra.mxu0 0.0
      %1240 = vmatprep.subr.mxu0 0.0
      %1241 = vmatpush1.msra.mxu0 0.0
      %1242 = vmatprep.subr.mxu0 0.0
      %1243 = vmatpush1.msra.mxu0 0.0
      %1244 = vmatprep.subr.mxu0 0.0
      %1245 = vmatpush1.msra.mxu0 0.0
      %1246 = vmatprep.subr.mxu0 0.0
      %1247 = vmatpush1.msra.mxu0 0.0
      %1248 = vmatprep.subr.mxu0 0.0
      %1249 = vmatpush1.msra.mxu0 0.0
      %1250 = vmatprep.subr.mxu0 0.0
      %1251 = vmatpush1.msra.mxu0 0.0
      %1252 = vmatprep.subr.mxu0 %v1218
      %1253 = vmatpush1.msra.mxu0 %v1216
      %1254 = vmatprep.subr.mxu0 0.0
      %1255 = vmatpush2.msra.mxu0 0.0
      %1256 = vmatprep.subr.mxu0 0.0
      %1257 = vmatpush2.msra.mxu0 0.0
      %1258 = vmatprep.subr.mxu0 0.0
      %1259 = vmatpush2.msra.mxu0 0.0
      %1260 = vmatprep.subr.mxu0 0.0
      %1261 = vmatpush2.msra.mxu0 0.0
      %1262 = vmatprep.subr.mxu0 0.0
      %1263 = vmatpush2.msra.mxu0 0.0
      %1264 = vmatprep.subr.mxu0 0.0
      %1265 = vmatpush2.msra.mxu0 0.0
      %1266 = vmatprep.subr.mxu0 0.0
      %1267 = vmatpush2.msra.mxu0 0.0
      %1268 = vmatprep.subr.mxu0 0.0
      %1269 = vmatpush2.msra.mxu0 0.0
      %1270 = vmatprep.subr.mxu0 0.0
      %1271 = vmatpush2.msra.mxu0 0.0
      %1272 = vmatprep.subr.mxu0 0.0
      %1273 = vmatpush2.msra.mxu0 0.0
      %1274 = vmatprep.subr.mxu0 0.0
      %1275 = vmatpush2.msra.mxu0 0.0
      %1276 = vmatprep.subr.mxu0 0.0
      %1277 = vmatpush2.msra.mxu0 0.0
      %1278 = vmatprep.subr.mxu0 0.0
      %1279 = vmatpush2.msra.mxu0 0.0
      %1280 = vmatprep.subr.mxu0 0.0
      %1281 = vmatpush2.msra.mxu0 0.0
      %1282 = vmatprep.subr.mxu0 0.0
      %1283 = vmatpush2.msra.mxu0 0.0
      %1284 = vmatprep.subr.mxu0 0.0
      %1285 = vmatpush2.msra.mxu0 0.0
      %1286 = vmatprep.mubr.f32.mxu0 0.0
      %1287 = vmatmul.mubr.f32.gmra.mxu0 %v1214
      %v1288 = vpop.f32.mrf.mxu0
      %v1289 = vadd.f32 0.0, %v1288
      %v1290 = vpop.f32.mrf.mxu0
      %v1291 = vadd.f32 0.0, %v1290
      %1292 = vdwg.mxu0
      %1293 = vmatprep.subr.mxu0 0.0
      %1294 = vmatpush1.msra.mxu0 0.0
      %1295 = vmatprep.subr.mxu0 0.0
      %1296 = vmatpush1.msra.mxu0 0.0
      %1297 = vmatprep.subr.mxu0 0.0
      %1298 = vmatpush1.msra.mxu0 0.0
      %1299 = vmatprep.subr.mxu0 0.0
      %1300 = vmatpush1.msra.mxu0 0.0
      %1301 = vmatprep.subr.mxu0 0.0
      %1302 = vmatpush1.msra.mxu0 0.0
      %1303 = vmatprep.subr.mxu0 0.0
      %1304 = vmatpush1.msra.mxu0 0.0
      %1305 = vmatprep.subr.mxu0 0.0
      %1306 = vmatpush1.msra.mxu0 0.0
      %1307 = vmatprep.subr.mxu0 0.0
      %1308 = vmatpush1.msra.mxu0 0.0
      %1309 = vmatprep.subr.mxu0 0.0
      %1310 = vmatpush1.msra.mxu0 0.0
      %1311 = vmatprep.subr.mxu0 0.0
      %1312 = vmatpush1.msra.mxu0 0.0
      %1313 = vmatprep.subr.mxu0 0.0
      %1314 = vmatpush1.msra.mxu0 0.0
      %1315 = vmatprep.subr.mxu0 0.0
      %1316 = vmatpush1.msra.mxu0 0.0
      %1317 = vmatprep.subr.mxu0 0.0
      %1318 = vmatpush1.msra.mxu0 0.0
      %1319 = vmatprep.subr.mxu0 0.0
      %1320 = vmatpush1.msra.mxu0 0.0
      %1321 = vmatprep.subr.mxu0 0.0
      %1322 = vmatpush1.msra.mxu0 0.0
      %1323 = vmatprep.subr.mxu0 0.0
      %1324 = vmatpush1.msra.mxu0 %v1220
      %1325 = vmatprep.subr.mxu0 0.0
      %1326 = vmatpush2.msra.mxu0 0.0
      %1327 = vmatprep.subr.mxu0 0.0
      %1328 = vmatpush2.msra.mxu0 0.0
      %1329 = vmatprep.subr.mxu0 0.0
      %1330 = vmatpush2.msra.mxu0 0.0
      %1331 = vmatprep.subr.mxu0 0.0
      %1332 = vmatpush2.msra.mxu0 0.0
      %1333 = vmatprep.subr.mxu0 0.0
      %1334 = vmatpush2.msra.mxu0 0.0
      %1335 = vmatprep.subr.mxu0 0.0
      %1336 = vmatpush2.msra.mxu0 0.0
      %1337 = vmatprep.subr.mxu0 0.0
      %1338 = vmatpush2.msra.mxu0 0.0
      %1339 = vmatprep.subr.mxu0 0.0
      %1340 = vmatpush2.msra.mxu0 0.0
      %1341 = vmatprep.subr.mxu0 0.0
      %1342 = vmatpush2.msra.mxu0 0.0
      %1343 = vmatprep.subr.mxu0 0.0
      %1344 = vmatpush2.msra.mxu0 0.0
      %1345 = vmatprep.subr.mxu0 0.0
      %1346 = vmatpush2.msra.mxu0 0.0
      %1347 = vmatprep.subr.mxu0 0.0
      %1348 = vmatpush2.msra.mxu0 0.0
      %1349 = vmatprep.subr.mxu0 0.0
      %1350 = vmatpush2.msra.mxu0 0.0
      %1351 = vmatprep.subr.mxu0 0.0
      %1352 = vmatpush2.msra.mxu0 0.0
      %1353 = vmatprep.subr.mxu0 0.0
      %1354 = vmatpush2.msra.mxu0 0.0
      %1355 = vmatprep.subr.mxu0 0.0
      %1356 = vmatpush2.msra.mxu0 0.0
      %1357 = vmatprep.mubr.f32.mxu0 0.0
      %1358 = vmatmul.mubr.f32.gmra.mxu0 %v1214
      %v1359 = vpop.f32.mrf.mxu0
      %v1360 = vadd.f32 0.0, %v1359
      %v1361 = vpop.f32.mrf.mxu0
      %1362 = vdwg.mxu0
      %v1363 = vadd.f32 %v1196, %v1289
      %v1364 = vadd.f32 %v1197, %v1291
      %v1365 = vadd.f32 %v1198, %v1360
      %s1366 = scalar_lea.vmem %s2, 48
      %v1367 = vld [vmem:[%s1366] sm:$0xff]
      %1368 = vrot.lane.b32.xlu0 %v374, 92
      %v1369 = vpop.permute.xlu0 %1368
      %1370 = vrot.lane.b32.xlu0 %v379, 92
      %v1371 = vpop.permute.xlu0 %1370
      %1372 = vrot.lane.b32.xlu0 %v375, 92
      %v1373 = vpop.permute.xlu0 %1372
      %1374 = vrot.lane.b32.xlu0 %v376, 92
      %v1375 = vpop.permute.xlu0 %1374
      %vm1376 = vcmask 752640
      %v1377 = vsel %vm1376, %v1369, %v1371
      %v1378 = vsel %vm1376, %v1371, %v1373
      %v1379 = vsel %vm1376, %v1373, %v1375
      %v1381 = vsel %vm396, %v1367, 0
      %v1383 = vsel %vm400, %v1377, 0
      %v1385 = vsel %vm400, %v1378, 0
      %v1387 = vsel %vm400, %v1379, 0
      %1389 = vmatprep.subr.mxu0 0.0
      %1390 = vmatpush1.msra.mxu0 0.0
      %1391 = vmatprep.subr.mxu0 0.0
      %1392 = vmatpush1.msra.mxu0 0.0
      %1393 = vmatprep.subr.mxu0 0.0
      %1394 = vmatpush1.msra.mxu0 0.0
      %1395 = vmatprep.subr.mxu0 0.0
      %1396 = vmatpush1.msra.mxu0 0.0
      %1397 = vmatprep.subr.mxu0 0.0
      %1398 = vmatpush1.msra.mxu0 0.0
      %1399 = vmatprep.subr.mxu0 0.0
      %1400 = vmatpush1.msra.mxu0 0.0
      %1401 = vmatprep.subr.mxu0 0.0
      %1402 = vmatpush1.msra.mxu0 0.0
      %1403 = vmatprep.subr.mxu0 0.0
      %1404 = vmatpush1.msra.mxu0 0.0
      %1405 = vmatprep.subr.mxu0 0.0
      %1406 = vmatpush1.msra.mxu0 0.0
      %1407 = vmatprep.subr.mxu0 0.0
      %1408 = vmatpush1.msra.mxu0 0.0
      %1409 = vmatprep.subr.mxu0 0.0
      %1410 = vmatpush1.msra.mxu0 0.0
      %1411 = vmatprep.subr.mxu0 0.0
      %1412 = vmatpush1.msra.mxu0 0.0
      %1413 = vmatprep.subr.mxu0 0.0
      %1414 = vmatpush1.msra.mxu0 0.0
      %1415 = vmatprep.subr.mxu0 0.0
      %1416 = vmatpush1.msra.mxu0 0.0
      %1417 = vmatprep.subr.mxu0 0.0
      %1418 = vmatpush1.msra.mxu0 0.0
      %1419 = vmatprep.subr.mxu0 %v1385
      %1420 = vmatpush1.msra.mxu0 %v1383
      %1421 = vmatprep.subr.mxu0 0.0
      %1422 = vmatpush2.msra.mxu0 0.0
      %1423 = vmatprep.subr.mxu0 0.0
      %1424 = vmatpush2.msra.mxu0 0.0
      %1425 = vmatprep.subr.mxu0 0.0
      %1426 = vmatpush2.msra.mxu0 0.0
      %1427 = vmatprep.subr.mxu0 0.0
      %1428 = vmatpush2.msra.mxu0 0.0
      %1429 = vmatprep.subr.mxu0 0.0
      %1430 = vmatpush2.msra.mxu0 0.0
      %1431 = vmatprep.subr.mxu0 0.0
      %1432 = vmatpush2.msra.mxu0 0.0
      %1433 = vmatprep.subr.mxu0 0.0
      %1434 = vmatpush2.msra.mxu0 0.0
      %1435 = vmatprep.subr.mxu0 0.0
      %1436 = vmatpush2.msra.mxu0 0.0
      %1437 = vmatprep.subr.mxu0 0.0
      %1438 = vmatpush2.msra.mxu0 0.0
      %1439 = vmatprep.subr.mxu0 0.0
      %1440 = vmatpush2.msra.mxu0 0.0
      %1441 = vmatprep.subr.mxu0 0.0
      %1442 = vmatpush2.msra.mxu0 0.0
      %1443 = vmatprep.subr.mxu0 0.0
      %1444 = vmatpush2.msra.mxu0 0.0
      %1445 = vmatprep.subr.mxu0 0.0
      %1446 = vmatpush2.msra.mxu0 0.0
      %1447 = vmatprep.subr.mxu0 0.0
      %1448 = vmatpush2.msra.mxu0 0.0
      %1449 = vmatprep.subr.mxu0 0.0
      %1450 = vmatpush2.msra.mxu0 0.0
      %1451 = vmatprep.subr.mxu0 0.0
      %1452 = vmatpush2.msra.mxu0 0.0
      %1453 = vmatprep.mubr.f32.mxu0 0.0
      %1454 = vmatmul.mubr.f32.gmra.mxu0 %v1381
      %v1455 = vpop.f32.mrf.mxu0
      %v1456 = vadd.f32 0.0, %v1455
      %v1457 = vpop.f32.mrf.mxu0
      %v1458 = vadd.f32 0.0, %v1457
      %1459 = vdwg.mxu0
      %1460 = vmatprep.subr.mxu0 0.0
      %1461 = vmatpush1.msra.mxu0 0.0
      %1462 = vmatprep.subr.mxu0 0.0
      %1463 = vmatpush1.msra.mxu0 0.0
      %1464 = vmatprep.subr.mxu0 0.0
      %1465 = vmatpush1.msra.mxu0 0.0
      %1466 = vmatprep.subr.mxu0 0.0
      %1467 = vmatpush1.msra.mxu0 0.0
      %1468 = vmatprep.subr.mxu0 0.0
      %1469 = vmatpush1.msra.mxu0 0.0
      %1470 = vmatprep.subr.mxu0 0.0
      %1471 = vmatpush1.msra.mxu0 0.0
      %1472 = vmatprep.subr.mxu0 0.0
      %1473 = vmatpush1.msra.mxu0 0.0
      %1474 = vmatprep.subr.mxu0 0.0
      %1475 = vmatpush1.msra.mxu0 0.0
      %1476 = vmatprep.subr.mxu0 0.0
      %1477 = vmatpush1.msra.mxu0 0.0
      %1478 = vmatprep.subr.mxu0 0.0
      %1479 = vmatpush1.msra.mxu0 0.0
      %1480 = vmatprep.subr.mxu0 0.0
      %1481 = vmatpush1.msra.mxu0 0.0
      %1482 = vmatprep.subr.mxu0 0.0
      %1483 = vmatpush1.msra.mxu0 0.0
      %1484 = vmatprep.subr.mxu0 0.0
      %1485 = vmatpush1.msra.mxu0 0.0
      %1486 = vmatprep.subr.mxu0 0.0
      %1487 = vmatpush1.msra.mxu0 0.0
      %1488 = vmatprep.subr.mxu0 0.0
      %1489 = vmatpush1.msra.mxu0 0.0
      %1490 = vmatprep.subr.mxu0 0.0
      %1491 = vmatpush1.msra.mxu0 %v1387
      %1492 = vmatprep.subr.mxu0 0.0
      %1493 = vmatpush2.msra.mxu0 0.0
      %1494 = vmatprep.subr.mxu0 0.0
      %1495 = vmatpush2.msra.mxu0 0.0
      %1496 = vmatprep.subr.mxu0 0.0
      %1497 = vmatpush2.msra.mxu0 0.0
      %1498 = vmatprep.subr.mxu0 0.0
      %1499 = vmatpush2.msra.mxu0 0.0
      %1500 = vmatprep.subr.mxu0 0.0
      %1501 = vmatpush2.msra.mxu0 0.0
      %1502 = vmatprep.subr.mxu0 0.0
      %1503 = vmatpush2.msra.mxu0 0.0
      %1504 = vmatprep.subr.mxu0 0.0
      %1505 = vmatpush2.msra.mxu0 0.0
      %1506 = vmatprep.subr.mxu0 0.0
      %1507 = vmatpush2.msra.mxu0 0.0
      %1508 = vmatprep.subr.mxu0 0.0
      %1509 = vmatpush2.msra.mxu0 0.0
      %1510 = vmatprep.subr.mxu0 0.0
      %1511 = vmatpush2.msra.mxu0 0.0
      %1512 = vmatprep.subr.mxu0 0.0
      %1513 = vmatpush2.msra.mxu0 0.0
      %1514 = vmatprep.subr.mxu0 0.0
      %1515 = vmatpush2.msra.mxu0 0.0
      %1516 = vmatprep.subr.mxu0 0.0
      %1517 = vmatpush2.msra.mxu0 0.0
      %1518 = vmatprep.subr.mxu0 0.0
      %1519 = vmatpush2.msra.mxu0 0.0
      %1520 = vmatprep.subr.mxu0 0.0
      %1521 = vmatpush2.msra.mxu0 0.0
      %1522 = vmatprep.subr.mxu0 0.0
      %1523 = vmatpush2.msra.mxu0 0.0
      %1524 = vmatprep.mubr.f32.mxu0 0.0
      %1525 = vmatmul.mubr.f32.gmra.mxu0 %v1381
      %v1526 = vpop.f32.mrf.mxu0
      %v1527 = vadd.f32 0.0, %v1526
      %v1528 = vpop.f32.mrf.mxu0
      %1529 = vdwg.mxu0
      %v1530 = vadd.f32 %v1363, %v1456
      %v1531 = vadd.f32 %v1364, %v1458
      %v1532 = vadd.f32 %v1365, %v1527
      %s1533 = scalar_lea.vmem %s2, 56
      %v1534 = vld [vmem:[%s1533] sm:$0xff]
      %1535 = vrot.lane.b32.xlu0 %v374, 91
      %v1536 = vpop.permute.xlu0 %1535
      %1537 = vrot.lane.b32.xlu0 %v379, 91
      %v1538 = vpop.permute.xlu0 %1537
      %1539 = vrot.lane.b32.xlu0 %v375, 91
      %v1540 = vpop.permute.xlu0 %1539
      %1541 = vrot.lane.b32.xlu0 %v376, 91
      %v1542 = vpop.permute.xlu0 %1541
      %vm1543 = vcmask 744448
      %v1544 = vsel %vm1543, %v1536, %v1538
      %v1545 = vsel %vm1543, %v1538, %v1540
      %v1546 = vsel %vm1543, %v1540, %v1542
      %v1548 = vsel %vm396, %v1534, 0
      %v1550 = vsel %vm400, %v1544, 0
      %v1552 = vsel %vm400, %v1545, 0
      %v1554 = vsel %vm400, %v1546, 0
      %1556 = vmatprep.subr.mxu0 0.0
      %1557 = vmatpush1.msra.mxu0 0.0
      %1558 = vmatprep.subr.mxu0 0.0
      %1559 = vmatpush1.msra.mxu0 0.0
      %1560 = vmatprep.subr.mxu0 0.0
      %1561 = vmatpush1.msra.mxu0 0.0
      %1562 = vmatprep.subr.mxu0 0.0
      %1563 = vmatpush1.msra.mxu0 0.0
      %1564 = vmatprep.subr.mxu0 0.0
      %1565 = vmatpush1.msra.mxu0 0.0
      %1566 = vmatprep.subr.mxu0 0.0
      %1567 = vmatpush1.msra.mxu0 0.0
      %1568 = vmatprep.subr.mxu0 0.0
      %1569 = vmatpush1.msra.mxu0 0.0
      %1570 = vmatprep.subr.mxu0 0.0
      %1571 = vmatpush1.msra.mxu0 0.0
      %1572 = vmatprep.subr.mxu0 0.0
      %1573 = vmatpush1.msra.mxu0 0.0
      %1574 = vmatprep.subr.mxu0 0.0
      %1575 = vmatpush1.msra.mxu0 0.0
      %1576 = vmatprep.subr.mxu0 0.0
      %1577 = vmatpush1.msra.mxu0 0.0
      %1578 = vmatprep.subr.mxu0 0.0
      %1579 = vmatpush1.msra.mxu0 0.0
      %1580 = vmatprep.subr.mxu0 0.0
      %1581 = vmatpush1.msra.mxu0 0.0
      %1582 = vmatprep.subr.mxu0 0.0
      %1583 = vmatpush1.msra.mxu0 0.0
      %1584 = vmatprep.subr.mxu0 0.0
      %1585 = vmatpush1.msra.mxu0 0.0
      %1586 = vmatprep.subr.mxu0 %v1552
      %1587 = vmatpush1.msra.mxu0 %v1550
      %1588 = vmatprep.subr.mxu0 0.0
      %1589 = vmatpush2.msra.mxu0 0.0
      %1590 = vmatprep.subr.mxu0 0.0
      %1591 = vmatpush2.msra.mxu0 0.0
      %1592 = vmatprep.subr.mxu0 0.0
      %1593 = vmatpush2.msra.mxu0 0.0
      %1594 = vmatprep.subr.mxu0 0.0
      %1595 = vmatpush2.msra.mxu0 0.0
      %1596 = vmatprep.subr.mxu0 0.0
      %1597 = vmatpush2.msra.mxu0 0.0
      %1598 = vmatprep.subr.mxu0 0.0
      %1599 = vmatpush2.msra.mxu0 0.0
      %1600 = vmatprep.subr.mxu0 0.0
      %1601 = vmatpush2.msra.mxu0 0.0
      %1602 = vmatprep.subr.mxu0 0.0
      %1603 = vmatpush2.msra.mxu0 0.0
      %1604 = vmatprep.subr.mxu0 0.0
      %1605 = vmatpush2.msra.mxu0 0.0
      %1606 = vmatprep.subr.mxu0 0.0
      %1607 = vmatpush2.msra.mxu0 0.0
      %1608 = vmatprep.subr.mxu0 0.0
      %1609 = vmatpush2.msra.mxu0 0.0
      %1610 = vmatprep.subr.mxu0 0.0
      %1611 = vmatpush2.msra.mxu0 0.0
      %1612 = vmatprep.subr.mxu0 0.0
      %1613 = vmatpush2.msra.mxu0 0.0
      %1614 = vmatprep.subr.mxu0 0.0
      %1615 = vmatpush2.msra.mxu0 0.0
      %1616 = vmatprep.subr.mxu0 0.0
      %1617 = vmatpush2.msra.mxu0 0.0
      %1618 = vmatprep.subr.mxu0 0.0
      %1619 = vmatpush2.msra.mxu0 0.0
      %1620 = vmatprep.mubr.f32.mxu0 0.0
      %1621 = vmatmul.mubr.f32.gmra.mxu0 %v1548
      %v1622 = vpop.f32.mrf.mxu0
      %v1623 = vadd.f32 0.0, %v1622
      %v1624 = vpop.f32.mrf.mxu0
      %v1625 = vadd.f32 0.0, %v1624
      %1626 = vdwg.mxu0
      %1627 = vmatprep.subr.mxu0 0.0
      %1628 = vmatpush1.msra.mxu0 0.0
      %1629 = vmatprep.subr.mxu0 0.0
      %1630 = vmatpush1.msra.mxu0 0.0
      %1631 = vmatprep.subr.mxu0 0.0
      %1632 = vmatpush1.msra.mxu0 0.0
      %1633 = vmatprep.subr.mxu0 0.0
      %1634 = vmatpush1.msra.mxu0 0.0
      %1635 = vmatprep.subr.mxu0 0.0
      %1636 = vmatpush1.msra.mxu0 0.0
      %1637 = vmatprep.subr.mxu0 0.0
      %1638 = vmatpush1.msra.mxu0 0.0
      %1639 = vmatprep.subr.mxu0 0.0
      %1640 = vmatpush1.msra.mxu0 0.0
      %1641 = vmatprep.subr.mxu0 0.0
      %1642 = vmatpush1.msra.mxu0 0.0
      %1643 = vmatprep.subr.mxu0 0.0
      %1644 = vmatpush1.msra.mxu0 0.0
      %1645 = vmatprep.subr.mxu0 0.0
      %1646 = vmatpush1.msra.mxu0 0.0
      %1647 = vmatprep.subr.mxu0 0.0
      %1648 = vmatpush1.msra.mxu0 0.0
      %1649 = vmatprep.subr.mxu0 0.0
      %1650 = vmatpush1.msra.mxu0 0.0
      %1651 = vmatprep.subr.mxu0 0.0
      %1652 = vmatpush1.msra.mxu0 0.0
      %1653 = vmatprep.subr.mxu0 0.0
      %1654 = vmatpush1.msra.mxu0 0.0
      %1655 = vmatprep.subr.mxu0 0.0
      %1656 = vmatpush1.msra.mxu0 0.0
      %1657 = vmatprep.subr.mxu0 0.0
      %1658 = vmatpush1.msra.mxu0 %v1554
      %1659 = vmatprep.subr.mxu0 0.0
      %1660 = vmatpush2.msra.mxu0 0.0
      %1661 = vmatprep.subr.mxu0 0.0
      %1662 = vmatpush2.msra.mxu0 0.0
      %1663 = vmatprep.subr.mxu0 0.0
      %1664 = vmatpush2.msra.mxu0 0.0
      %1665 = vmatprep.subr.mxu0 0.0
      %1666 = vmatpush2.msra.mxu0 0.0
      %1667 = vmatprep.subr.mxu0 0.0
      %1668 = vmatpush2.msra.mxu0 0.0
      %1669 = vmatprep.subr.mxu0 0.0
      %1670 = vmatpush2.msra.mxu0 0.0
      %1671 = vmatprep.subr.mxu0 0.0
      %1672 = vmatpush2.msra.mxu0 0.0
      %1673 = vmatprep.subr.mxu0 0.0
      %1674 = vmatpush2.msra.mxu0 0.0
      %1675 = vmatprep.subr.mxu0 0.0
      %1676 = vmatpush2.msra.mxu0 0.0
      %1677 = vmatprep.subr.mxu0 0.0
      %1678 = vmatpush2.msra.mxu0 0.0
      %1679 = vmatprep.subr.mxu0 0.0
      %1680 = vmatpush2.msra.mxu0 0.0
      %1681 = vmatprep.subr.mxu0 0.0
      %1682 = vmatpush2.msra.mxu0 0.0
      %1683 = vmatprep.subr.mxu0 0.0
      %1684 = vmatpush2.msra.mxu0 0.0
      %1685 = vmatprep.subr.mxu0 0.0
      %1686 = vmatpush2.msra.mxu0 0.0
      %1687 = vmatprep.subr.mxu0 0.0
      %1688 = vmatpush2.msra.mxu0 0.0
      %1689 = vmatprep.subr.mxu0 0.0
      %1690 = vmatpush2.msra.mxu0 0.0
      %1691 = vmatprep.mubr.f32.mxu0 0.0
      %1692 = vmatmul.mubr.f32.gmra.mxu0 %v1548
      %v1693 = vpop.f32.mrf.mxu0
      %v1694 = vadd.f32 0.0, %v1693
      %v1695 = vpop.f32.mrf.mxu0
      %1696 = vdwg.mxu0
      %v1697 = vadd.f32 %v1530, %v1623
      %v1698 = vadd.f32 %v1531, %v1625
      %v1699 = vadd.f32 %v1532, %v1694
      %s1700 = scalar_lea.vmem %s2, 64
      %v1701 = vld [vmem:[%s1700] sm:$0xff]
      %1702 = vrot.lane.b32.xlu0 %v374, 90
      %v1703 = vpop.permute.xlu0 %1702
      %1704 = vrot.lane.b32.xlu0 %v379, 90
      %v1705 = vpop.permute.xlu0 %1704
      %1706 = vrot.lane.b32.xlu0 %v375, 90
      %v1707 = vpop.permute.xlu0 %1706
      %1708 = vrot.lane.b32.xlu0 %v376, 90
      %v1709 = vpop.permute.xlu0 %1708
      %vm1710 = vcmask 736256
      %v1711 = vsel %vm1710, %v1703, %v1705
      %v1712 = vsel %vm1710, %v1705, %v1707
      %v1713 = vsel %vm1710, %v1707, %v1709
      %v1715 = vsel %vm396, %v1701, 0
      %v1717 = vsel %vm400, %v1711, 0
      %v1719 = vsel %vm400, %v1712, 0
      %v1721 = vsel %vm400, %v1713, 0
      %1723 = vmatprep.subr.mxu0 0.0
      %1724 = vmatpush1.msra.mxu0 0.0
      %1725 = vmatprep.subr.mxu0 0.0
      %1726 = vmatpush1.msra.mxu0 0.0
      %1727 = vmatprep.subr.mxu0 0.0
      %1728 = vmatpush1.msra.mxu0 0.0
      %1729 = vmatprep.subr.mxu0 0.0
      %1730 = vmatpush1.msra.mxu0 0.0
      %1731 = vmatprep.subr.mxu0 0.0
      %1732 = vmatpush1.msra.mxu0 0.0
      %1733 = vmatprep.subr.mxu0 0.0
      %1734 = vmatpush1.msra.mxu0 0.0
      %1735 = vmatprep.subr.mxu0 0.0
      %1736 = vmatpush1.msra.mxu0 0.0
      %1737 = vmatprep.subr.mxu0 0.0
      %1738 = vmatpush1.msra.mxu0 0.0
      %1739 = vmatprep.subr.mxu0 0.0
      %1740 = vmatpush1.msra.mxu0 0.0
      %1741 = vmatprep.subr.mxu0 0.0
      %1742 = vmatpush1.msra.mxu0 0.0
      %1743 = vmatprep.subr.mxu0 0.0
      %1744 = vmatpush1.msra.mxu0 0.0
      %1745 = vmatprep.subr.mxu0 0.0
      %1746 = vmatpush1.msra.mxu0 0.0
      %1747 = vmatprep.subr.mxu0 0.0
      %1748 = vmatpush1.msra.mxu0 0.0
      %1749 = vmatprep.subr.mxu0 0.0
      %1750 = vmatpush1.msra.mxu0 0.0
      %1751 = vmatprep.subr.mxu0 0.0
      %1752 = vmatpush1.msra.mxu0 0.0
      %1753 = vmatprep.subr.mxu0 %v1719
      %1754 = vmatpush1.msra.mxu0 %v1717
      %1755 = vmatprep.subr.mxu0 0.0
      %1756 = vmatpush2.msra.mxu0 0.0
      %1757 = vmatprep.subr.mxu0 0.0
      %1758 = vmatpush2.msra.mxu0 0.0
      %1759 = vmatprep.subr.mxu0 0.0
      %1760 = vmatpush2.msra.mxu0 0.0
      %1761 = vmatprep.subr.mxu0 0.0
      %1762 = vmatpush2.msra.mxu0 0.0
      %1763 = vmatprep.subr.mxu0 0.0
      %1764 = vmatpush2.msra.mxu0 0.0
      %1765 = vmatprep.subr.mxu0 0.0
      %1766 = vmatpush2.msra.mxu0 0.0
      %1767 = vmatprep.subr.mxu0 0.0
      %1768 = vmatpush2.msra.mxu0 0.0
      %1769 = vmatprep.subr.mxu0 0.0
      %1770 = vmatpush2.msra.mxu0 0.0
      %1771 = vmatprep.subr.mxu0 0.0
      %1772 = vmatpush2.msra.mxu0 0.0
      %1773 = vmatprep.subr.mxu0 0.0
      %1774 = vmatpush2.msra.mxu0 0.0
      %1775 = vmatprep.subr.mxu0 0.0
      %1776 = vmatpush2.msra.mxu0 0.0
      %1777 = vmatprep.subr.mxu0 0.0
      %1778 = vmatpush2.msra.mxu0 0.0
      %1779 = vmatprep.subr.mxu0 0.0
      %1780 = vmatpush2.msra.mxu0 0.0
      %1781 = vmatprep.subr.mxu0 0.0
      %1782 = vmatpush2.msra.mxu0 0.0
      %1783 = vmatprep.subr.mxu0 0.0
      %1784 = vmatpush2.msra.mxu0 0.0
      %1785 = vmatprep.subr.mxu0 0.0
      %1786 = vmatpush2.msra.mxu0 0.0
      %1787 = vmatprep.mubr.f32.mxu0 0.0
      %1788 = vmatmul.mubr.f32.gmra.mxu0 %v1715
      %v1789 = vpop.f32.mrf.mxu0
      %v1790 = vadd.f32 0.0, %v1789
      %v1791 = vpop.f32.mrf.mxu0
      %v1792 = vadd.f32 0.0, %v1791
      %1793 = vdwg.mxu0
      %1794 = vmatprep.subr.mxu0 0.0
      %1795 = vmatpush1.msra.mxu0 0.0
      %1796 = vmatprep.subr.mxu0 0.0
      %1797 = vmatpush1.msra.mxu0 0.0
      %1798 = vmatprep.subr.mxu0 0.0
      %1799 = vmatpush1.msra.mxu0 0.0
      %1800 = vmatprep.subr.mxu0 0.0
      %1801 = vmatpush1.msra.mxu0 0.0
      %1802 = vmatprep.subr.mxu0 0.0
      %1803 = vmatpush1.msra.mxu0 0.0
      %1804 = vmatprep.subr.mxu0 0.0
      %1805 = vmatpush1.msra.mxu0 0.0
      %1806 = vmatprep.subr.mxu0 0.0
      %1807 = vmatpush1.msra.mxu0 0.0
      %1808 = vmatprep.subr.mxu0 0.0
      %1809 = vmatpush1.msra.mxu0 0.0
      %1810 = vmatprep.subr.mxu0 0.0
      %1811 = vmatpush1.msra.mxu0 0.0
      %1812 = vmatprep.subr.mxu0 0.0
      %1813 = vmatpush1.msra.mxu0 0.0
      %1814 = vmatprep.subr.mxu0 0.0
      %1815 = vmatpush1.msra.mxu0 0.0
      %1816 = vmatprep.subr.mxu0 0.0
      %1817 = vmatpush1.msra.mxu0 0.0
      %1818 = vmatprep.subr.mxu0 0.0
      %1819 = vmatpush1.msra.mxu0 0.0
      %1820 = vmatprep.subr.mxu0 0.0
      %1821 = vmatpush1.msra.mxu0 0.0
      %1822 = vmatprep.subr.mxu0 0.0
      %1823 = vmatpush1.msra.mxu0 0.0
      %1824 = vmatprep.subr.mxu0 0.0
      %1825 = vmatpush1.msra.mxu0 %v1721
      %1826 = vmatprep.subr.mxu0 0.0
      %1827 = vmatpush2.msra.mxu0 0.0
      %1828 = vmatprep.subr.mxu0 0.0
      %1829 = vmatpush2.msra.mxu0 0.0
      %1830 = vmatprep.subr.mxu0 0.0
      %1831 = vmatpush2.msra.mxu0 0.0
      %1832 = vmatprep.subr.mxu0 0.0
      %1833 = vmatpush2.msra.mxu0 0.0
      %1834 = vmatprep.subr.mxu0 0.0
      %1835 = vmatpush2.msra.mxu0 0.0
      %1836 = vmatprep.subr.mxu0 0.0
      %1837 = vmatpush2.msra.mxu0 0.0
      %1838 = vmatprep.subr.mxu0 0.0
      %1839 = vmatpush2.msra.mxu0 0.0
      %1840 = vmatprep.subr.mxu0 0.0
      %1841 = vmatpush2.msra.mxu0 0.0
      %1842 = vmatprep.subr.mxu0 0.0
      %1843 = vmatpush2.msra.mxu0 0.0
      %1844 = vmatprep.subr.mxu0 0.0
      %1845 = vmatpush2.msra.mxu0 0.0
      %1846 = vmatprep.subr.mxu0 0.0
      %1847 = vmatpush2.msra.mxu0 0.0
      %1848 = vmatprep.subr.mxu0 0.0
      %1849 = vmatpush2.msra.mxu0 0.0
      %1850 = vmatprep.subr.mxu0 0.0
      %1851 = vmatpush2.msra.mxu0 0.0
      %1852 = vmatprep.subr.mxu0 0.0
      %1853 = vmatpush2.msra.mxu0 0.0
      %1854 = vmatprep.subr.mxu0 0.0
      %1855 = vmatpush2.msra.mxu0 0.0
      %1856 = vmatprep.subr.mxu0 0.0
      %1857 = vmatpush2.msra.mxu0 0.0
      %1858 = vmatprep.mubr.f32.mxu0 0.0
      %1859 = vmatmul.mubr.f32.gmra.mxu0 %v1715
      %v1860 = vpop.f32.mrf.mxu0
      %v1861 = vadd.f32 0.0, %v1860
      %v1862 = vpop.f32.mrf.mxu0
      %1863 = vdwg.mxu0
      %v1864 = vadd.f32 %v1697, %v1790
      %v1865 = vadd.f32 %v1698, %v1792
      %v1866 = vadd.f32 %v1699, %v1861
      %1867 = vst [vmem:[%s364] sm:$0xff] %v1864
      %1868 = vst [vmem:[%s364 + $0x8] sm:$0xff] %v1865
      %1869 = vst [vmem:[%s364 + $0x10] sm:$0xff] %v1866
      %p1870 = scmp.eq.s32.totalorder %s23, 0
      // Predicated region
      $region37: #{conv_pack_layer.2} parent=35 // pred_check
        %p1871 = pneg %p1870
      $region38: #{conv_pack_layer.2} parent=35 // pred_check_branch
        %1873 = sbr.rel (%p1871) target = $region40
      $region39: #{conv_pack_layer.2} parent=35 // pred_region
        %vm1874 = vcmask 7168
        %1875 = vst.msk [vmem:[%s369] sm:$0xff] %vm1874, 0.0
        %1876 = vst.msk [vmem:[%s373] sm:$0xff] %vm1874, 0.0
      $region40: #{conv_pack_layer.2} parent=35 // pred_fallthru
        _
      %v1877 = vld [vmem:[%s354] sm:$0x7]
      %v1879 = vlaneseq
      %v1880 = vshrl.u32 %v1879, 7
      %v1881 = vsub.s32 0, %v1880
      %v1882 = vrot.slane %v1877, %v1881
      %v1883 = vlaneseq
      %v1884 = vshrl.u32 %v1883, 7
      %v1885 = vsub.s32 1, %v1884
      %v1886 = vrot.slane %v1877, %v1885
      %v1887 = vlaneseq
      %v1888 = vshrl.u32 %v1887, 7
      %v1889 = vsub.s32 2, %v1888
      %v1890 = vrot.slane %v1877, %v1889
      %v1894 = vmul.f32 %v1864, %v1882
      %v1895 = vmul.f32 %v1865, %v1886
      %v1896 = vmul.f32 %v1866, %v1890
      %v1897 = vld [vmem:[%s369] sm:$0xff]
      %v1898 = vadd.f32 %v1894, %v1895
      %v1899 = vadd.f32 %v1898, %v1896
      %1900 = vadd.xlane.f32.xlu0 %v1899
      %v1901 = vpop.xlane.xlu0 %1900
      %v1902 = vadd.f32 %v1897, %v1901
      %vm1903 = vcmask 7168
      %1904 = vst.msk [vmem:[%s369] sm:$0xff] %vm1903, %v1902
      %v1905 = vld [vmem:[%s373] sm:$0xff]
      %v1906 = vmul.f32 %v1894, %v1894
      %v1907 = vmul.f32 %v1895, %v1895
      %v1908 = vmul.f32 %v1896, %v1896
      %v1909 = vadd.f32 %v1906, %v1907
      %v1910 = vadd.f32 %v1909, %v1908
      %1911 = vadd.xlane.f32.xlu0 %v1910
      %v1912 = vpop.xlane.xlu0 %1911
      %v1913 = vadd.f32 %v1905, %v1912
      %1914 = vst.msk [vmem:[%s373] sm:$0xff] %vm1903, %v1913
      %s1915 = smul.u32 3, %s23
      %p1916 = scmp.lt.s32.totalorder %s22, 1
      %s1917 = scalar_select %p1916, %s22, 1
      %p1918 = scmp.lt.s32.totalorder %s1915, 2
      %s1919 = scalar_select %p1918, %s1915, 2
      %s1920 = smul.addr %s1917, 3
      %s1921 = sadd.s32 %s1919, %s1920
      %s1922 = smul.addr %s1921, 8
      %s1923 = scalar_lea.vmem %s4, %s1922
      %p1924 = scmp.lt.s32.totalorder %s22, 1
      %s1925 = scalar_select %p1924, %s22, 1
      %s1926 = smul.addr %s1925, 8
      %s1927 = scalar_lea.vmem %s5, %s1926
      %p1928 = scmp.lt.s32.totalorder %s22, 1
      %s1929 = scalar_select %p1928, %s22, 1
      %s1930 = smul.addr %s1929, 8
      %s1931 = scalar_lea.vmem %s6, %s1930
      // Predicated region
      $region41: #{conv_pack_layer.2} parent=35 // pred_check
        %p1932 = pneg %p155
      $region42: #{conv_pack_layer.2} parent=35 // pred_check_branch
        %1934 = sbr.rel (%p1932) target = $region44
      $region43: #{conv_pack_layer.2} parent=35 // pred_region
        %s1935 = smul.u32 3, %s23
      $region44: #{conv_pack_layer.2} parent=35 // pred_fallthru
        _
      // Predicated region
      $region45: #{conv_pack_layer.2} parent=35 // pred_check
        %p1936 = pneg %p181
      $region46: #{conv_pack_layer.2} parent=35 // pred_check_branch
        %1938 = sbr.rel (%p1936) target = $region48
      $region47: #{conv_pack_layer.2} parent=35 // pred_region
        _
      $region48: #{conv_pack_layer.2} parent=35 // pred_fallthru
        _
      // Predicated region
      $region49: #{conv_pack_layer.2} parent=35 // pred_check
        %p1939 = pneg %p207
      $region50: #{conv_pack_layer.2} parent=35 // pred_check_branch
        %1941 = sbr.rel (%p1939) target = $region52
      $region51: #{conv_pack_layer.2} parent=35 // pred_region
        _
      $region52: #{conv_pack_layer.2} parent=35 // pred_fallthru
        _
    $region36: #{conv_pack_layer.2} parent=5 // pred_fallthru
      _
    %p1942 = scmp.le.s32.totalorder 2, %s13
    // Predicated region
    $region53: #{conv_pack_layer.2} parent=5 // pred_check
      %p1943 = pneg %p1942
    $region54: #{conv_pack_layer.2} parent=5 // pred_check_branch
      %1945 = sbr.rel (%p1943) target = $region56
    $region55: #{conv_pack_layer.2} parent=5 // pred_region
      %s1946 = ssub.s32 %s13, 2
      // Predicated region
      $region57: #{conv_pack_layer.2} parent=55 // pred_check
        %p1947 = pneg %p161
      $region58: #{conv_pack_layer.2} parent=55 // pred_check_branch
        %1949 = sbr.rel (%p1947) target = $region60
      $region59: #{conv_pack_layer.2} parent=55 // pred_region
        %s1950 = smul.u32 3, %s25
        %p1951 = scmp.lt.s32.totalorder %s24, 1
        %s1952 = scalar_select %p1951, %s24, 1
        %p1953 = scmp.lt.s32.totalorder %s1950, 2
        %s1954 = scalar_select %p1953, %s1950, 2
        %s1955 = smul.addr %s1952, 3
        %s1956 = sadd.s32 %s1954, %s1955
        %s1957 = smul.addr %s1956, 8
        %s1958 = scalar_lea.vmem %s4, %s1957
      $region60: #{conv_pack_layer.2} parent=55 // pred_fallthru
        _
      // Predicated region
      $region61: #{conv_pack_layer.2} parent=55 // pred_check
        %p1959 = pneg %p187
      $region62: #{conv_pack_layer.2} parent=55 // pred_check_branch
        %1961 = sbr.rel (%p1959) target = $region64
      $region63: #{conv_pack_layer.2} parent=55 // pred_region
        %p1962 = scmp.lt.s32.totalorder %s24, 1
        %s1963 = scalar_select %p1962, %s24, 1
        %s1964 = smul.addr %s1963, 8
        %s1965 = scalar_lea.vmem %s5, %s1964
      $region64: #{conv_pack_layer.2} parent=55 // pred_fallthru
        _
      // Predicated region
      $region65: #{conv_pack_layer.2} parent=55 // pred_check
        %p1966 = pneg %p213
      $region66: #{conv_pack_layer.2} parent=55 // pred_check_branch
        %1968 = sbr.rel (%p1966) target = $region68
      $region67: #{conv_pack_layer.2} parent=55 // pred_region
        %p1969 = scmp.lt.s32.totalorder %s24, 1
        %s1970 = scalar_select %p1969, %s24, 1
        %s1971 = smul.addr %s1970, 8
        %s1972 = scalar_lea.vmem %s6, %s1971
      $region68: #{conv_pack_layer.2} parent=55 // pred_fallthru
        _
    $region56: #{conv_pack_layer.2} parent=5 // pred_fallthru
      _
  $region6: #{conv_pack_layer.2} parent=0 // loop_footer
    %s17 = sadd.s32 1, %s13
  $region7: #{conv_pack_layer.2} parent=0 // loop_footer_branch
    %12 = sbr.rel target = $region3
  $region8: #{conv_pack_layer.2} parent=0 // loop_exit
    _

</llo_original>
